<compile_context>
chip_gen: v5e
topology: v5e:2x2
jax: 0.10.0
libtpu: 0.0.40
codegen_flags: <defaults>
</compile_context>

<pallas_src>
import jax
import jax.numpy as jnp
from jax.experimental import pallas as pl
from jax.experimental.pallas import tpu as pltpu

# 256 fills the MXU M-dim on v6e/v7x (2x256 systolic) and is 2x128 on v5e.
# Per-step VMEM footprint is well under 1 MiB, so it fits every chip's
# default scoped VMEM limit with plenty of pipelining headroom.
TILE_B = 256


def _mlp_kernel(x_ref,
                w1_ref, b1_ref,
                w2_ref, b2_ref,
                w3_ref, b3_ref,
                w4_ref, b4_ref,
                o_ref):
    # x tile: (TILE_B, F). Weights/biases are resident across all grid steps.
    x = x_ref[...].astype(jnp.bfloat16)

    h1 = jnp.dot(x, w1_ref[...], preferred_element_type=jnp.float32) + b1_ref[...]
    h1 = jnp.maximum(h1, 0.0).astype(jnp.bfloat16)                 # relu (f32 math)

    h2 = jnp.dot(h1, w2_ref[...], preferred_element_type=jnp.float32) + b2_ref[...]
    h2 = jax.nn.sigmoid(h2).astype(jnp.bfloat16)                   # sigmoid (f32 math)

    h3 = jnp.dot(h2, w3_ref[...], preferred_element_type=jnp.float32) + b3_ref[...]
    h3 = jnp.tanh(h3)                                              # tanh, keep f32

    # fc4 (32 -> 1): VPU multiply + lane reduction instead of an N=1 MXU matmul.
    # Produces a lane-dense (1, TILE_B) output row.
    h4 = jnp.sum(h3 * w4_ref[...], axis=-1)                        # (TILE_B,)
    h4 = h4.reshape(1, -1) + b4_ref[...]                           # (1, TILE_B)
    out = jax.nn.sigmoid(h4)                                       # sigmoid
    o_ref[...] = out.reshape(o_ref.shape).astype(o_ref.dtype)


def net_forward(x, params):
    """x: (B, F) float32.  params: dict of (W, b) per layer, W stored (in, out)."""
    B, F = x.shape
    w1, b1 = params["fc1"]
    w2, b2 = params["fc2"]
    w3, b3 = params["fc3"]
    w4, b4 = params["fc4"]

    # bf16 matmul weights (resident in VMEM); biases stay f32.
    w1b = w1.astype(jnp.bfloat16)
    w2b = w2.astype(jnp.bfloat16)
    w3b = w3.astype(jnp.bfloat16)
    w4_row = w4.reshape(1, -1).astype(jnp.float32)   # (1, 32), VPU path stays f32
    b4_s = b4.reshape(1, 1).astype(jnp.float32)

    n_tiles = pl.cdiv(B, TILE_B)
    B_pad = n_tiles * TILE_B
    if B_pad != B:
        x = jnp.pad(x, ((0, B_pad - B), (0, 0)))

    def const(a):
        return pl.BlockSpec(a.shape, lambda i: (0,) * a.ndim)

    out = pl.pallas_call(
        _mlp_kernel,
        out_shape=jax.ShapeDtypeStruct((n_tiles, 1, TILE_B), jnp.float32),
        grid=(n_tiles,),
        in_specs=[pl.BlockSpec((TILE_B, F), lambda i: (i, 0)),
                  const(w1b), const(b1),
                  const(w2b), const(b2),
                  const(w3b), const(b3),
                  const(w4_row), const(b4_s)],
        out_specs=pl.BlockSpec((1, 1, TILE_B), lambda i: (i, 0, 0)),
        compiler_params=pltpu.CompilerParams(
            dimension_semantics=("parallel",)),
    )(x, w1b, b1, w2b, b2, w3b, b3, w4_row, b4_s)

    # Lane-dense kernel output -> (B, 1) column, drop padding rows.
    return out.reshape(-1)[:B].reshape(B, 1)


def init_params(key, input_shape):
    """Deterministic init matching nn.Linear shapes (W stored as (in, out))."""
    dims = [(input_shape, 128), (128, 64), (64, 32), (32, 1)]
    names = ["fc1", "fc2", "fc3", "fc4"]
    params = {}
    for name, (fan_in, fan_out) in zip(names, dims):
        key, kw, kb = jax.random.split(key, 3)
        bound = 1.0 / jnp.sqrt(fan_in)  # PyTorch default uniform bound
        w = jax.random.uniform(kw, (fan_in, fan_out), jnp.float32, -bound, bound)
        b = jax.random.uniform(kb, (1, fan_out), jnp.float32, -bound, bound)
        params[name] = (w, b)
    return params


def reference_forward(x, params):
    """Plain-JAX f32 reference for a sanity check."""
    w1, b1 = params["fc1"]; w2, b2 = params["fc2"]
    w3, b3 = params["fc3"]; w4, b4 = params["fc4"]
    h = jnp.maximum(x @ w1 + b1, 0.0)
    h = jax.nn.sigmoid(h @ w2 + b2)
    h = jnp.tanh(h @ w3 + b3)
    return jax.nn.sigmoid(h @ w4 + b4)


if __name__ == "__main__":
    key = jax.random.PRNGKey(0)
    key, kx, kp = jax.random.split(key, 3)

    B, F = 8, 8  # small batch, 8 tabular features (Titanic-style)
    x = jax.random.normal(kx, (B, F), jnp.float32)
    params = init_params(kp, F)

    out = jax.block_until_ready(net_forward(x, params))
    ref = reference_forward(x, params)
    assert out.shape == (B, 1)
    assert jnp.allclose(out, ref, atol=1e-2, rtol=1e-2), \
        float(jnp.max(jnp.abs(out - ref)))

    # Also exercise the multi-tile + padding path (B not a multiple of TILE_B).
    x2 = jax.random.normal(jax.random.PRNGKey(1), (300, F), jnp.float32)
    out2 = jax.block_until_ready(net_forward(x2, params))
    ref2 = reference_forward(x2, params)
    assert out2.shape == (300, 1)
    assert jnp.allclose(out2, ref2, atol=1e-2, rtol=1e-2), \
        float(jnp.max(jnp.abs(out2 - ref2)))

    print("KERNEL_OK")
</pallas_src>

<mosaic_0001>
module attributes {stable_mosaic.version = 11 : i64} {
  func.func @_mlp_kernel(%arg0: i32, %arg1: memref<256x8xf32, #tpu.memory_space<vmem>>, %arg2: memref<8x128xbf16, #tpu.memory_space<vmem>>, %arg3: memref<1x128xf32, #tpu.memory_space<vmem>>, %arg4: memref<128x64xbf16, #tpu.memory_space<vmem>>, %arg5: memref<1x64xf32, #tpu.memory_space<vmem>>, %arg6: memref<64x32xbf16, #tpu.memory_space<vmem>>, %arg7: memref<1x32xf32, #tpu.memory_space<vmem>>, %arg8: memref<1x32xf32, #tpu.memory_space<vmem>>, %arg9: memref<1x1xf32, #tpu.memory_space<vmem>>, %arg10: memref<1x1x256xf32, #tpu.memory_space<vmem>>) attributes {dimension_semantics = [#tpu.dimension_semantics<parallel>], iteration_bounds = array<i64: 1>, scalar_prefetch = 0 : i64, scratch_operands = 0 : i64, tpu.core_type = #tpu.core_type<tc>, window_params = [{transform_indices = @transform_0, window_bounds = array<i64: 256, 8>}, {pipeline_mode = #tpu.pipeline_mode<synchronous>, transform_indices = @transform_1, window_bounds = array<i64: 8, 128>}, {pipeline_mode = #tpu.pipeline_mode<synchronous>, transform_indices = @transform_2, window_bounds = array<i64: 1, 128>}, {pipeline_mode = #tpu.pipeline_mode<synchronous>, transform_indices = @transform_3, window_bounds = array<i64: 128, 64>}, {pipeline_mode = #tpu.pipeline_mode<synchronous>, transform_indices = @transform_4, window_bounds = array<i64: 1, 64>}, {pipeline_mode = #tpu.pipeline_mode<synchronous>, transform_indices = @transform_5, window_bounds = array<i64: 64, 32>}, {pipeline_mode = #tpu.pipeline_mode<synchronous>, transform_indices = @transform_6, window_bounds = array<i64: 1, 32>}, {pipeline_mode = #tpu.pipeline_mode<synchronous>, transform_indices = @transform_7, window_bounds = array<i64: 1, 32>}, {pipeline_mode = #tpu.pipeline_mode<synchronous>, transform_indices = @transform_8, window_bounds = array<i64: 1, 1>}, {transform_indices = @transform_9, window_bounds = array<i64: 1, 1, 256>}]} {
    %c0 = arith.constant 0 : index
    %c0_0 = arith.constant 0 : index
    %0 = vector.load %arg1[%c0, %c0_0] : memref<256x8xf32, #tpu.memory_space<vmem>>, vector<256x8xf32>
    %1 = arith.truncf %0 : vector<256x8xf32> to vector<256x8xbf16>
    %c0_1 = arith.constant 0 : index
    %c0_2 = arith.constant 0 : index
    %2 = vector.load %arg2[%c0_1, %c0_2] : memref<8x128xbf16, #tpu.memory_space<vmem>>, vector<8x128xbf16>
    %cst = arith.constant dense<0.000000e+00> : vector<256x128xf32>
    %3 = tpu.matmul %1, %2, %cst {dimension_numbers = #tpu.dot_dimension_numbers<[1], [0], [0], [1], [0, 0, 1, 1], [], []>} : vector<256x8xbf16>, vector<8x128xbf16>, vector<256x128xf32> -> vector<256x128xf32>
    %c0_3 = arith.constant 0 : index
    %c0_4 = arith.constant 0 : index
    %4 = vector.load %arg3[%c0_3, %c0_4] : memref<1x128xf32, #tpu.memory_space<vmem>>, vector<1x128xf32>
    %5 = vector.broadcast %4 : vector<1x128xf32> to vector<256x128xf32>
    %6 = arith.addf %3, %5 : vector<256x128xf32>
    %cst_5 = arith.constant 0.000000e+00 : f32
    %7 = vector.broadcast %cst_5 : f32 to vector<256x128xf32>
    %8 = arith.maximumf %6, %7 : vector<256x128xf32>
    %9 = arith.truncf %8 : vector<256x128xf32> to vector<256x128xbf16>
    %c0_6 = arith.constant 0 : index
    %c0_7 = arith.constant 0 : index
    %10 = vector.load %arg4[%c0_6, %c0_7] : memref<128x64xbf16, #tpu.memory_space<vmem>>, vector<128x64xbf16>
    %cst_8 = arith.constant dense<0.000000e+00> : vector<256x64xf32>
    %11 = tpu.matmul %9, %10, %cst_8 {dimension_numbers = #tpu.dot_dimension_numbers<[1], [0], [0], [1], [0, 0, 1, 1], [], []>} : vector<256x128xbf16>, vector<128x64xbf16>, vector<256x64xf32> -> vector<256x64xf32>
    %c0_9 = arith.constant 0 : index
    %c0_10 = arith.constant 0 : index
    %12 = vector.load %arg5[%c0_9, %c0_10] : memref<1x64xf32, #tpu.memory_space<vmem>>, vector<1x64xf32>
    %13 = vector.broadcast %12 : vector<1x64xf32> to vector<256x64xf32>
    %14 = arith.addf %11, %13 : vector<256x64xf32>
    %15 = arith.negf %14 : vector<256x64xf32>
    %16 = math.exp %15 : vector<256x64xf32>
    %cst_11 = arith.constant 1.000000e+00 : f32
    %17 = vector.broadcast %cst_11 : f32 to vector<256x64xf32>
    %18 = arith.addf %17, %16 : vector<256x64xf32>
    %19 = arith.divf %17, %18 : vector<256x64xf32>
    %20 = arith.truncf %19 : vector<256x64xf32> to vector<256x64xbf16>
    %c0_12 = arith.constant 0 : index
    %c0_13 = arith.constant 0 : index
    %21 = vector.load %arg6[%c0_12, %c0_13] : memref<64x32xbf16, #tpu.memory_space<vmem>>, vector<64x32xbf16>
    %cst_14 = arith.constant dense<0.000000e+00> : vector<256x32xf32>
    %22 = tpu.matmul %20, %21, %cst_14 {dimension_numbers = #tpu.dot_dimension_numbers<[1], [0], [0], [1], [0, 0, 1, 1], [], []>} : vector<256x64xbf16>, vector<64x32xbf16>, vector<256x32xf32> -> vector<256x32xf32>
    %c0_15 = arith.constant 0 : index
    %c0_16 = arith.constant 0 : index
    %23 = vector.load %arg7[%c0_15, %c0_16] : memref<1x32xf32, #tpu.memory_space<vmem>>, vector<1x32xf32>
    %24 = vector.broadcast %23 : vector<1x32xf32> to vector<256x32xf32>
    %25 = arith.addf %22, %24 : vector<256x32xf32>
    %26 = math.tanh %25 : vector<256x32xf32>
    %c0_17 = arith.constant 0 : index
    %c0_18 = arith.constant 0 : index
    %27 = vector.load %arg8[%c0_17, %c0_18] : memref<1x32xf32, #tpu.memory_space<vmem>>, vector<1x32xf32>
    %28 = vector.broadcast %27 : vector<1x32xf32> to vector<256x32xf32>
    %29 = arith.mulf %26, %28 : vector<256x32xf32>
    %cst_19 = arith.constant dense<0.000000e+00> : vector<256xf32>
    %30 = vector.multi_reduction <add>, %29, %cst_19 [1] : vector<256x32xf32> to vector<256xf32>
    %31 = vector.shape_cast %30 : vector<256xf32> to vector<1x256xf32>
    %c0_20 = arith.constant 0 : index
    %c0_21 = arith.constant 0 : index
    %32 = vector.load %arg9[%c0_20, %c0_21] : memref<1x1xf32, #tpu.memory_space<vmem>>, vector<1x1xf32>
    %33 = vector.broadcast %32 : vector<1x1xf32> to vector<1x256xf32>
    %34 = arith.addf %31, %33 : vector<1x256xf32>
    %35 = arith.negf %34 : vector<1x256xf32>
    %36 = math.exp %35 : vector<1x256xf32>
    %cst_22 = arith.constant 1.000000e+00 : f32
    %37 = vector.broadcast %cst_22 : f32 to vector<1x256xf32>
    %38 = arith.addf %37, %36 : vector<1x256xf32>
    %39 = arith.divf %37, %38 : vector<1x256xf32>
    %40 = vector.shape_cast %39 : vector<1x256xf32> to vector<1x1x256xf32>
    %c0_23 = arith.constant 0 : index
    %c0_24 = arith.constant 0 : index
    %c0_25 = arith.constant 0 : index
    %41 = vector.load %arg10[%c0_23, %c0_24, %c0_25] : memref<1x1x256xf32, #tpu.memory_space<vmem>>, vector<1x1x256xf32>
    tpu.vector_store %arg10[%c0_23, %c0_24, %c0_25], %40 {strides = array<i32>} : memref<1x1x256xf32, #tpu.memory_space<vmem>>, vector<1x1x256xf32>,
    return
  }
  func.func @transform_0(%arg0: i32) -> (i32, i32) {
    %c0_i32 = arith.constant 0 : i32
    %c0_i32_0 = arith.constant 0 : i32
    return %arg0, %c0_i32 : i32, i32
  }
  func.func @transform_1(%arg0: i32) -> (i32, i32) {
    %c0_i32 = arith.constant 0 : i32
    %c0_i32_0 = arith.constant 0 : i32
    %c0_i32_1 = arith.constant 0 : i32
    return %c0_i32, %c0_i32_0 : i32, i32
  }
  func.func @transform_2(%arg0: i32) -> (i32, i32) {
    %c0_i32 = arith.constant 0 : i32
    %c0_i32_0 = arith.constant 0 : i32
    %c0_i32_1 = arith.constant 0 : i32
    return %c0_i32, %c0_i32_0 : i32, i32
  }
  func.func @transform_3(%arg0: i32) -> (i32, i32) {
    %c0_i32 = arith.constant 0 : i32
    %c0_i32_0 = arith.constant 0 : i32
    %c0_i32_1 = arith.constant 0 : i32
    return %c0_i32, %c0_i32_0 : i32, i32
  }
  func.func @transform_4(%arg0: i32) -> (i32, i32) {
    %c0_i32 = arith.constant 0 : i32
    %c0_i32_0 = arith.constant 0 : i32
    %c0_i32_1 = arith.constant 0 : i32
    return %c0_i32, %c0_i32_0 : i32, i32
  }
  func.func @transform_5(%arg0: i32) -> (i32, i32) {
    %c0_i32 = arith.constant 0 : i32
    %c0_i32_0 = arith.constant 0 : i32
    %c0_i32_1 = arith.constant 0 : i32
    return %c0_i32, %c0_i32_0 : i32, i32
  }
  func.func @transform_6(%arg0: i32) -> (i32, i32) {
    %c0_i32 = arith.constant 0 : i32
    %c0_i32_0 = arith.constant 0 : i32
    %c0_i32_1 = arith.constant 0 : i32
    return %c0_i32, %c0_i32_0 : i32, i32
  }
  func.func @transform_7(%arg0: i32) -> (i32, i32) {
    %c0_i32 = arith.constant 0 : i32
    %c0_i32_0 = arith.constant 0 : i32
    %c0_i32_1 = arith.constant 0 : i32
    return %c0_i32, %c0_i32_0 : i32, i32
  }
  func.func @transform_8(%arg0: i32) -> (i32, i32) {
    %c0_i32 = arith.constant 0 : i32
    %c0_i32_0 = arith.constant 0 : i32
    %c0_i32_1 = arith.constant 0 : i32
    return %c0_i32, %c0_i32_0 : i32, i32
  }
  func.func @transform_9(%arg0: i32) -> (i32, i32, i32) {
    %c0_i32 = arith.constant 0 : i32
    %c0_i32_0 = arith.constant 0 : i32
    %c0_i32_1 = arith.constant 0 : i32
    return %arg0, %c0_i32, %c0_i32_0 : i32, i32, i32
  }
}

</mosaic_0001>

<llo_original>
// kernel: tpu_custom_call.1
$region0: #{tpu_custom_call.1}
  #allocation0 [shape = 'u32[]', space=smem, size = 0x4, offset = 0x4, fixed_abs, tag = 'smem constant byte address 0x4 - core index']
  #allocation1 [shape = 'u32[72,128]{1,0:T(1,128)}', space=vmem, size = 0x9000, scoped, tag = 'internal scratch']
  #allocation2 [shape = 'f32[1,1]{1,0:T(1,128)S(1)}', space=vmem, size = 0x200, scoped, tag = 'scoped memory for tpu_custom_call.1']
  %s0 = inlined_call_operand.vmem [shape: f32[256,8], index: 0, kind: input, shape index: {}]
  %s1 = inlined_call_operand.vmem [shape: bf16[8,128], index: 1, kind: input, shape index: {}]
  %s2 = inlined_call_operand.vmem [shape: f32[1,128], index: 2, kind: input, shape index: {}]
  %s3 = inlined_call_operand.vmem [shape: bf16[128,64], index: 3, kind: input, shape index: {}]
  %s4 = inlined_call_operand.vmem [shape: f32[1,64], index: 4, kind: input, shape index: {}]
  %s5 = inlined_call_operand.vmem [shape: bf16[64,32], index: 5, kind: input, shape index: {}]
  %s6 = inlined_call_operand.vmem [shape: f32[1,32], index: 6, kind: input, shape index: {}]
  %s7 = inlined_call_operand.vmem [shape: f32[1,32], index: 7, kind: input, shape index: {}]
  %s8 = inlined_call_operand.<no memory space> [shape: f32[1,1], index: 8, kind: input, shape index: {}]
  %s9 = inlined_call_operand.hbm [shape: f32[1,1,256], index: 9, kind: output, shape index: {}]
  %s10 = sld [smem:[#allocation0]]
  $region46: #{tpu_custom_call.1} parent=0
    _
  %s12 = ssub.s32 1, %s10
  %s13 = scalar_select 0, %s12, %s10
  %v14 = vstv %s8
  %15 = vst [vmem:[#allocation2] sm:$0x1] %v14
  $region1: #{tpu_custom_call.1} parent=0
    #allocation3 [shape = 'u8[1024]{0}', space=vmem, size = 0x400, scoped, tag = 'output window, operand 0, single buffered']
    #allocation4 [shape = 's32[1]{0}', space=sflag, size = 0x4, scoped, tag = 'scoped memory for tpu_custom_call.1']
    %16 = vsyncpa [#allocation4], 0
    // Predicated region
    $region2: #{tpu_custom_call.1} parent=1 // pred_check
      _
    $region3: #{tpu_custom_call.1} parent=1 // pred_check_branch
      %18 = sbr.rel (0) target = $region5
    $region4: #{tpu_custom_call.1} parent=1 // pred_region
      _
    $region5: #{tpu_custom_call.1} parent=1 // pred_fallthru
      _
    // Predicated region
    $region6: #{tpu_custom_call.1} parent=1 // pred_check
      _
    $region7: #{tpu_custom_call.1} parent=1 // pred_check_branch
      %20 = sbr.rel (0) target = $region9
    $region8: #{tpu_custom_call.1} parent=1 // pred_region
      _
    $region9: #{tpu_custom_call.1} parent=1 // pred_fallthru
      _
    // Predicated region
    $region10: #{tpu_custom_call.1} parent=1 // pred_check
      _
    $region11: #{tpu_custom_call.1} parent=1 // pred_check_branch
      %22 = sbr.rel (0) target = $region13
    $region12: #{tpu_custom_call.1} parent=1 // pred_region
      _
    $region13: #{tpu_custom_call.1} parent=1 // pred_fallthru
      _
    // Predicated region
    $region14: #{tpu_custom_call.1} parent=1 // pred_check
      _
    $region15: #{tpu_custom_call.1} parent=1 // pred_check_branch
      %24 = sbr.rel (0) target = $region17
    $region16: #{tpu_custom_call.1} parent=1 // pred_region
      _
    $region17: #{tpu_custom_call.1} parent=1 // pred_fallthru
      _
    // Predicated region
    $region18: #{tpu_custom_call.1} parent=1 // pred_check
      _
    $region19: #{tpu_custom_call.1} parent=1 // pred_check_branch
      %26 = sbr.rel (0) target = $region21
    $region20: #{tpu_custom_call.1} parent=1 // pred_region
      _
    $region21: #{tpu_custom_call.1} parent=1 // pred_fallthru
      _
    // Predicated region
    $region22: #{tpu_custom_call.1} parent=1 // pred_check
      _
    $region23: #{tpu_custom_call.1} parent=1 // pred_check_branch
      %28 = sbr.rel (0) target = $region25
    $region24: #{tpu_custom_call.1} parent=1 // pred_region
      _
    $region25: #{tpu_custom_call.1} parent=1 // pred_fallthru
      _
    // Predicated region
    $region26: #{tpu_custom_call.1} parent=1 // pred_check
      _
    $region27: #{tpu_custom_call.1} parent=1 // pred_check_branch
      %30 = sbr.rel (0) target = $region29
    $region28: #{tpu_custom_call.1} parent=1 // pred_region
      _
    $region29: #{tpu_custom_call.1} parent=1 // pred_fallthru
      _
    // Predicated region
    $region30: #{tpu_custom_call.1} parent=1 // pred_check
      _
    $region31: #{tpu_custom_call.1} parent=1 // pred_check_branch
      %32 = sbr.rel (0) target = $region33
    $region32: #{tpu_custom_call.1} parent=1 // pred_region
      _
    $region33: #{tpu_custom_call.1} parent=1 // pred_fallthru
      _
    // Predicated region
    $region34: #{tpu_custom_call.1} parent=1 // pred_check
      _
    $region35: #{tpu_custom_call.1} parent=1 // pred_check_branch
      %34 = sbr.rel (0) target = $region37
    $region36: #{tpu_custom_call.1} parent=1 // pred_region
      _
    $region37: #{tpu_custom_call.1} parent=1 // pred_fallthru
      _
    %v36 = vld [vmem:[%s0] sm:$0xff]
    %v37 = vld [vmem:[%s0 + $0x8] sm:$0xff]
    %v38 = vld [vmem:[%s0 + $0x10] sm:$0xff]
    %v39 = vld [vmem:[%s0 + $0x18] sm:$0xff]
    %v40 = vld [vmem:[%s0 + $0x20] sm:$0xff]
    %v41 = vld [vmem:[%s0 + $0x28] sm:$0xff]
    %v42 = vld [vmem:[%s0 + $0x30] sm:$0xff]
    %v43 = vld [vmem:[%s0 + $0x38] sm:$0xff]
    %v44 = vld [vmem:[%s0 + $0x40] sm:$0xff]
    %v45 = vld [vmem:[%s0 + $0x48] sm:$0xff]
    %v46 = vld [vmem:[%s0 + $0x50] sm:$0xff]
    %v47 = vld [vmem:[%s0 + $0x58] sm:$0xff]
    %v48 = vld [vmem:[%s0 + $0x60] sm:$0xff]
    %v49 = vld [vmem:[%s0 + $0x68] sm:$0xff]
    %v50 = vld [vmem:[%s0 + $0x70] sm:$0xff]
    %v51 = vld [vmem:[%s0 + $0x78] sm:$0xff]
    %v52 = vld [vmem:[%s0 + $0x80] sm:$0xff]
    %v53 = vld [vmem:[%s0 + $0x88] sm:$0xff]
    %v54 = vld [vmem:[%s0 + $0x90] sm:$0xff]
    %v55 = vld [vmem:[%s0 + $0x98] sm:$0xff]
    %v56 = vld [vmem:[%s0 + $0xa0] sm:$0xff]
    %v57 = vld [vmem:[%s0 + $0xa8] sm:$0xff]
    %v58 = vld [vmem:[%s0 + $0xb0] sm:$0xff]
    %v59 = vld [vmem:[%s0 + $0xb8] sm:$0xff]
    %v60 = vld [vmem:[%s0 + $0xc0] sm:$0xff]
    %v61 = vld [vmem:[%s0 + $0xc8] sm:$0xff]
    %v62 = vld [vmem:[%s0 + $0xd0] sm:$0xff]
    %v63 = vld [vmem:[%s0 + $0xd8] sm:$0xff]
    %v64 = vld [vmem:[%s0 + $0xe0] sm:$0xff]
    %v65 = vld [vmem:[%s0 + $0xe8] sm:$0xff]
    %v66 = vld [vmem:[%s0 + $0xf0] sm:$0xff]
    %v67 = vld [vmem:[%s0 + $0xf8] sm:$0xff]
    %v68 = vpack.c.bf16 %v37, %v36
    %v69 = vpack.c.bf16 %v39, %v38
    %v70 = vpack.c.bf16 %v41, %v40
    %v71 = vpack.c.bf16 %v43, %v42
    %v72 = vpack.c.bf16 %v45, %v44
    %v73 = vpack.c.bf16 %v47, %v46
    %v74 = vpack.c.bf16 %v49, %v48
    %v75 = vpack.c.bf16 %v51, %v50
    %v76 = vpack.c.bf16 %v53, %v52
    %v77 = vpack.c.bf16 %v55, %v54
    %v78 = vpack.c.bf16 %v57, %v56
    %v79 = vpack.c.bf16 %v59, %v58
    %v80 = vpack.c.bf16 %v61, %v60
    %v81 = vpack.c.bf16 %v63, %v62
    %v82 = vpack.c.bf16 %v65, %v64
    %v83 = vpack.c.bf16 %v67, %v66
    %v84 = vld [vmem:[%s1] sm:$0xf]
    %v85 = vld [vmem:[%s2] sm:$0x1]
    %v87 = vperm.slane %v85, 0
    %vm89 = vcmask 64512
    %v91 = vsel %vm89, %v68, 0
    %v94 = vsel %vm89, %v69, 0
    %v97 = vsel %vm89, %v70, 0
    %v100 = vsel %vm89, %v71, 0
    %v103 = vsel %vm89, %v72, 0
    %v106 = vsel %vm89, %v73, 0
    %v109 = vsel %vm89, %v74, 0
    %v112 = vsel %vm89, %v75, 0
    %v115 = vsel %vm89, %v76, 0
    %v118 = vsel %vm89, %v77, 0
    %v121 = vsel %vm89, %v78, 0
    %v124 = vsel %vm89, %v79, 0
    %v127 = vsel %vm89, %v80, 0
    %v130 = vsel %vm89, %v81, 0
    %v133 = vsel %vm89, %v82, 0
    %v136 = vsel %vm89, %v83, 0
    %vm138 = vcmask 1043456
    %v140 = vsel %vm138, %v84, 0
    %142 = vmatpush.bf16.msra.mxu0 0
    %143 = vmatpush.bf16.msra.mxu0 0
    %144 = vmatpush.bf16.msra.mxu0 0
    %145 = vmatpush.bf16.msra.mxu0 0
    %146 = vmatpush.bf16.msra.mxu0 0
    %147 = vmatpush.bf16.msra.mxu0 0
    %148 = vmatpush.bf16.msra.mxu0 0
    %149 = vmatpush.bf16.msra.mxu0 %v140
    %150 = vmatmul.bf16.gmra.mxu0 %v91
    %v151 = vpop.f32.mrf.mxu0
    %v152 = vadd.f32 %v87, %v151
    %v153 = vpop.f32.mrf.mxu0
    %v154 = vadd.f32 %v87, %v153
    %155 = vmatmul.bf16.gmra.mxu0 %v94
    %v156 = vpop.f32.mrf.mxu0
    %v157 = vadd.f32 %v87, %v156
    %v158 = vpop.f32.mrf.mxu0
    %v159 = vadd.f32 %v87, %v158
    %160 = vmatmul.bf16.gmra.mxu0 %v97
    %v161 = vpop.f32.mrf.mxu0
    %v162 = vadd.f32 %v87, %v161
    %v163 = vpop.f32.mrf.mxu0
    %v164 = vadd.f32 %v87, %v163
    %165 = vmatmul.bf16.gmra.mxu0 %v100
    %v166 = vpop.f32.mrf.mxu0
    %v167 = vadd.f32 %v87, %v166
    %v168 = vpop.f32.mrf.mxu0
    %v169 = vadd.f32 %v87, %v168
    %170 = vmatmul.bf16.gmra.mxu0 %v103
    %v171 = vpop.f32.mrf.mxu0
    %v172 = vadd.f32 %v87, %v171
    %v173 = vpop.f32.mrf.mxu0
    %v174 = vadd.f32 %v87, %v173
    %175 = vmatmul.bf16.gmra.mxu0 %v106
    %v176 = vpop.f32.mrf.mxu0
    %v177 = vadd.f32 %v87, %v176
    %v178 = vpop.f32.mrf.mxu0
    %v179 = vadd.f32 %v87, %v178
    %180 = vmatmul.bf16.gmra.mxu0 %v109
    %v181 = vpop.f32.mrf.mxu0
    %v182 = vadd.f32 %v87, %v181
    %v183 = vpop.f32.mrf.mxu0
    %v184 = vadd.f32 %v87, %v183
    %185 = vmatmul.bf16.gmra.mxu0 %v112
    %v186 = vpop.f32.mrf.mxu0
    %v187 = vadd.f32 %v87, %v186
    %v188 = vpop.f32.mrf.mxu0
    %v189 = vadd.f32 %v87, %v188
    %190 = vmatmul.bf16.gmra.mxu0 %v115
    %v191 = vpop.f32.mrf.mxu0
    %v192 = vadd.f32 %v87, %v191
    %v193 = vpop.f32.mrf.mxu0
    %v194 = vadd.f32 %v87, %v193
    %195 = vmatmul.bf16.gmra.mxu0 %v118
    %v196 = vpop.f32.mrf.mxu0
    %v197 = vadd.f32 %v87, %v196
    %v198 = vpop.f32.mrf.mxu0
    %v199 = vadd.f32 %v87, %v198
    %200 = vmatmul.bf16.gmra.mxu0 %v121
    %v201 = vpop.f32.mrf.mxu0
    %v202 = vadd.f32 %v87, %v201
    %v203 = vpop.f32.mrf.mxu0
    %v204 = vadd.f32 %v87, %v203
    %205 = vmatmul.bf16.gmra.mxu0 %v124
    %v206 = vpop.f32.mrf.mxu0
    %v207 = vadd.f32 %v87, %v206
    %v208 = vpop.f32.mrf.mxu0
    %v209 = vadd.f32 %v87, %v208
    %210 = vmatmul.bf16.gmra.mxu0 %v127
    %v211 = vpop.f32.mrf.mxu0
    %v212 = vadd.f32 %v87, %v211
    %v213 = vpop.f32.mrf.mxu0
    %v214 = vadd.f32 %v87, %v213
    %215 = vmatmul.bf16.gmra.mxu0 %v130
    %v216 = vpop.f32.mrf.mxu0
    %v217 = vadd.f32 %v87, %v216
    %v218 = vpop.f32.mrf.mxu0
    %v219 = vadd.f32 %v87, %v218
    %220 = vmatmul.bf16.gmra.mxu0 %v133
    %v221 = vpop.f32.mrf.mxu0
    %v222 = vadd.f32 %v87, %v221
    %v223 = vpop.f32.mrf.mxu0
    %v224 = vadd.f32 %v87, %v223
    %225 = vmatmul.bf16.gmra.mxu0 %v136
    %v226 = vpop.f32.mrf.mxu0
    %v227 = vadd.f32 %v87, %v226
    %v228 = vpop.f32.mrf.mxu0
    %v229 = vadd.f32 %v87, %v228
    %230 = vdwg.mxu0
    %v231 = vmax.f32 %v152, 0.0
    %v232 = vmax.f32 %v154, 0.0
    %v233 = vmax.f32 %v157, 0.0
    %v234 = vmax.f32 %v159, 0.0
    %v235 = vmax.f32 %v162, 0.0
    %v236 = vmax.f32 %v164, 0.0
    %v237 = vmax.f32 %v167, 0.0
    %v238 = vmax.f32 %v169, 0.0
    %v239 = vmax.f32 %v172, 0.0
    %v240 = vmax.f32 %v174, 0.0
    %v241 = vmax.f32 %v177, 0.0
    %v242 = vmax.f32 %v179, 0.0
    %v243 = vmax.f32 %v182, 0.0
    %v244 = vmax.f32 %v184, 0.0
    %v245 = vmax.f32 %v187, 0.0
    %v246 = vmax.f32 %v189, 0.0
    %v247 = vmax.f32 %v192, 0.0
    %v248 = vmax.f32 %v194, 0.0
    %v249 = vmax.f32 %v197, 0.0
    %v250 = vmax.f32 %v199, 0.0
    %v251 = vmax.f32 %v202, 0.0
    %v252 = vmax.f32 %v204, 0.0
    %v253 = vmax.f32 %v207, 0.0
    %v254 = vmax.f32 %v209, 0.0
    %v255 = vmax.f32 %v212, 0.0
    %v256 = vmax.f32 %v214, 0.0
    %v257 = vmax.f32 %v217, 0.0
    %v258 = vmax.f32 %v219, 0.0
    %v259 = vmax.f32 %v222, 0.0
    %v260 = vmax.f32 %v224, 0.0
    %v261 = vmax.f32 %v227, 0.0
    %v262 = vmax.f32 %v229, 0.0
    %v263 = vpack.c.bf16 %v232, %v231
    %v264 = vpack.c.bf16 %v234, %v233
    %v265 = vpack.c.bf16 %v236, %v235
    %v266 = vpack.c.bf16 %v238, %v237
    %v267 = vpack.c.bf16 %v240, %v239
    %v268 = vpack.c.bf16 %v242, %v241
    %v269 = vpack.c.bf16 %v244, %v243
    %v270 = vpack.c.bf16 %v246, %v245
    %v271 = vpack.c.bf16 %v248, %v247
    %v272 = vpack.c.bf16 %v250, %v249
    %v273 = vpack.c.bf16 %v252, %v251
    %v274 = vpack.c.bf16 %v254, %v253
    %v275 = vpack.c.bf16 %v256, %v255
    %v276 = vpack.c.bf16 %v258, %v257
    %v277 = vpack.c.bf16 %v260, %v259
    %v278 = vpack.c.bf16 %v262, %v261
    %v279 = vld [vmem:[%s3] sm:$0xf]
    %v280 = vld [vmem:[%s3 + $0x4] sm:$0xf]
    %v281 = vld [vmem:[%s3 + $0x8] sm:$0xf]
    %v282 = vld [vmem:[%s3 + $0xc] sm:$0xf]
    %v283 = vld [vmem:[%s3 + $0x10] sm:$0xf]
    %v284 = vld [vmem:[%s3 + $0x14] sm:$0xf]
    %v285 = vld [vmem:[%s3 + $0x18] sm:$0xf]
    %v286 = vld [vmem:[%s3 + $0x1c] sm:$0xf]
    %v287 = vld [vmem:[%s3 + $0x20] sm:$0xf]
    %v288 = vld [vmem:[%s3 + $0x24] sm:$0xf]
    %v289 = vld [vmem:[%s3 + $0x28] sm:$0xf]
    %v290 = vld [vmem:[%s3 + $0x2c] sm:$0xf]
    %v291 = vld [vmem:[%s3 + $0x30] sm:$0xf]
    %v292 = vld [vmem:[%s3 + $0x34] sm:$0xf]
    %v293 = vld [vmem:[%s3 + $0x38] sm:$0xf]
    %v294 = vld [vmem:[%s3 + $0x3c] sm:$0xf]
    %v295 = vld [vmem:[%s4] sm:$0x1]
    %v297 = vperm.slane %v295, 0
    %v315 = vunpack.c.l.b16 %v279
    %v316 = vunpack.c.l.b16 %v280
    %v317 = vunpack.c.l.b16 %v281
    %v318 = vunpack.c.l.b16 %v282
    %v319 = vunpack.c.l.b16 %v283
    %v320 = vunpack.c.l.b16 %v284
    %v321 = vunpack.c.l.b16 %v285
    %v322 = vunpack.c.l.b16 %v286
    %v323 = vunpack.c.l.b16 %v287
    %v324 = vunpack.c.l.b16 %v288
    %v325 = vunpack.c.l.b16 %v289
    %v326 = vunpack.c.l.b16 %v290
    %v327 = vunpack.c.l.b16 %v291
    %v328 = vunpack.c.l.b16 %v292
    %v329 = vunpack.c.l.b16 %v293
    %v330 = vunpack.c.l.b16 %v294
    %v331 = vpack.c.b16 %v316, %v315
    %v332 = vpack.c.b16 %v318, %v317
    %v333 = vpack.c.b16 %v320, %v319
    %v334 = vpack.c.b16 %v322, %v321
    %v335 = vpack.c.b16 %v324, %v323
    %v336 = vpack.c.b16 %v326, %v325
    %v337 = vpack.c.b16 %v328, %v327
    %v338 = vpack.c.b16 %v330, %v329
    %347 = vmatpush.bf16.msra.mxu0 %v338
    %348 = vmatpush.bf16.msra.mxu0 %v337
    %349 = vmatpush.bf16.msra.mxu0 %v336
    %350 = vmatpush.bf16.msra.mxu0 %v335
    %351 = vmatpush.bf16.msra.mxu0 %v334
    %352 = vmatpush.bf16.msra.mxu0 %v333
    %353 = vmatpush.bf16.msra.mxu0 %v332
    %354 = vmatpush.bf16.msra.mxu0 %v331
    %355 = vmatmul.bf16.gmra.mxu0 %v263
    %v356 = vpop.f32.mrf.mxu0
    %v357 = vadd.f32 %v297, %v356
    %v358 = vpop.f32.mrf.mxu0
    %v359 = vadd.f32 %v297, %v358
    %360 = vmatmul.bf16.gmra.mxu0 %v264
    %v361 = vpop.f32.mrf.mxu0
    %v362 = vadd.f32 %v297, %v361
    %v363 = vpop.f32.mrf.mxu0
    %v364 = vadd.f32 %v297, %v363
    %365 = vmatmul.bf16.gmra.mxu0 %v265
    %v366 = vpop.f32.mrf.mxu0
    %v367 = vadd.f32 %v297, %v366
    %v368 = vpop.f32.mrf.mxu0
    %v369 = vadd.f32 %v297, %v368
    %370 = vmatmul.bf16.gmra.mxu0 %v266
    %v371 = vpop.f32.mrf.mxu0
    %v372 = vadd.f32 %v297, %v371
    %v373 = vpop.f32.mrf.mxu0
    %v374 = vadd.f32 %v297, %v373
    %375 = vmatmul.bf16.gmra.mxu0 %v267
    %v376 = vpop.f32.mrf.mxu0
    %v377 = vadd.f32 %v297, %v376
    %v378 = vpop.f32.mrf.mxu0
    %v379 = vadd.f32 %v297, %v378
    %380 = vmatmul.bf16.gmra.mxu0 %v268
    %v381 = vpop.f32.mrf.mxu0
    %v382 = vadd.f32 %v297, %v381
    %v383 = vpop.f32.mrf.mxu0
    %v384 = vadd.f32 %v297, %v383
    %385 = vmatmul.bf16.gmra.mxu0 %v269
    %v386 = vpop.f32.mrf.mxu0
    %v387 = vadd.f32 %v297, %v386
    %v388 = vpop.f32.mrf.mxu0
    %v389 = vadd.f32 %v297, %v388
    %390 = vmatmul.bf16.gmra.mxu0 %v270
    %v391 = vpop.f32.mrf.mxu0
    %v392 = vadd.f32 %v297, %v391
    %v393 = vpop.f32.mrf.mxu0
    %v394 = vadd.f32 %v297, %v393
    %395 = vmatmul.bf16.gmra.mxu0 %v271
    %v396 = vpop.f32.mrf.mxu0
    %v397 = vadd.f32 %v297, %v396
    %v398 = vpop.f32.mrf.mxu0
    %v399 = vadd.f32 %v297, %v398
    %400 = vmatmul.bf16.gmra.mxu0 %v272
    %v401 = vpop.f32.mrf.mxu0
    %v402 = vadd.f32 %v297, %v401
    %v403 = vpop.f32.mrf.mxu0
    %v404 = vadd.f32 %v297, %v403
    %405 = vmatmul.bf16.gmra.mxu0 %v273
    %v406 = vpop.f32.mrf.mxu0
    %v407 = vadd.f32 %v297, %v406
    %v408 = vpop.f32.mrf.mxu0
    %v409 = vadd.f32 %v297, %v408
    %410 = vmatmul.bf16.gmra.mxu0 %v274
    %v411 = vpop.f32.mrf.mxu0
    %v412 = vadd.f32 %v297, %v411
    %v413 = vpop.f32.mrf.mxu0
    %v414 = vadd.f32 %v297, %v413
    %415 = vmatmul.bf16.gmra.mxu0 %v275
    %v416 = vpop.f32.mrf.mxu0
    %v417 = vadd.f32 %v297, %v416
    %v418 = vpop.f32.mrf.mxu0
    %v419 = vadd.f32 %v297, %v418
    %420 = vmatmul.bf16.gmra.mxu0 %v276
    %v421 = vpop.f32.mrf.mxu0
    %v422 = vadd.f32 %v297, %v421
    %v423 = vpop.f32.mrf.mxu0
    %v424 = vadd.f32 %v297, %v423
    %425 = vmatmul.bf16.gmra.mxu0 %v277
    %v426 = vpop.f32.mrf.mxu0
    %v427 = vadd.f32 %v297, %v426
    %v428 = vpop.f32.mrf.mxu0
    %v429 = vadd.f32 %v297, %v428
    %430 = vmatmul.bf16.gmra.mxu0 %v278
    %v431 = vpop.f32.mrf.mxu0
    %v432 = vadd.f32 %v297, %v431
    %v433 = vpop.f32.mrf.mxu0
    %v434 = vadd.f32 %v297, %v433
    %435 = vdwg.mxu0
    %v436 = vxor.u32 %v357, 2147483648
    %v437 = vxor.u32 %v359, 2147483648
    %v438 = vxor.u32 %v362, 2147483648
    %v439 = vxor.u32 %v364, 2147483648
    %v440 = vxor.u32 %v367, 2147483648
    %v441 = vxor.u32 %v369, 2147483648
    %v442 = vxor.u32 %v372, 2147483648
    %v443 = vxor.u32 %v374, 2147483648
    %v444 = vxor.u32 %v377, 2147483648
    %v445 = vxor.u32 %v379, 2147483648
    %v446 = vxor.u32 %v382, 2147483648
    %v447 = vxor.u32 %v384, 2147483648
    %v448 = vxor.u32 %v387, 2147483648
    %v449 = vxor.u32 %v389, 2147483648
    %v450 = vxor.u32 %v392, 2147483648
    %v451 = vxor.u32 %v394, 2147483648
    %v452 = vxor.u32 %v397, 2147483648
    %v453 = vxor.u32 %v399, 2147483648
    %v454 = vxor.u32 %v402, 2147483648
    %v455 = vxor.u32 %v404, 2147483648
    %v456 = vxor.u32 %v407, 2147483648
    %v457 = vxor.u32 %v409, 2147483648
    %v458 = vxor.u32 %v412, 2147483648
    %v459 = vxor.u32 %v414, 2147483648
    %v460 = vxor.u32 %v417, 2147483648
    %v461 = vxor.u32 %v419, 2147483648
    %v462 = vxor.u32 %v422, 2147483648
    %v463 = vxor.u32 %v424, 2147483648
    %v464 = vxor.u32 %v427, 2147483648
    %v465 = vxor.u32 %v429, 2147483648
    %v466 = vxor.u32 %v432, 2147483648
    %v467 = vxor.u32 %v434, 2147483648
    %v468 = vmul.f32 %v436, 1.442695
    %v469 = vpow.pop %v468
    %v470 = vmul.f32 %v437, 1.442695
    %v471 = vpow.pop %v470
    %v472 = vmul.f32 %v438, 1.442695
    %v473 = vpow.pop %v472
    %v474 = vmul.f32 %v439, 1.442695
    %v475 = vpow.pop %v474
    %v476 = vmul.f32 %v440, 1.442695
    %v477 = vpow.pop %v476
    %v478 = vmul.f32 %v441, 1.442695
    %v479 = vpow.pop %v478
    %v480 = vmul.f32 %v442, 1.442695
    %v481 = vpow.pop %v480
    %v482 = vmul.f32 %v443, 1.442695
    %v483 = vpow.pop %v482
    %v484 = vmul.f32 %v444, 1.442695
    %v485 = vpow.pop %v484
    %v486 = vmul.f32 %v445, 1.442695
    %v487 = vpow.pop %v486
    %v488 = vmul.f32 %v446, 1.442695
    %v489 = vpow.pop %v488
    %v490 = vmul.f32 %v447, 1.442695
    %v491 = vpow.pop %v490
    %v492 = vmul.f32 %v448, 1.442695
    %v493 = vpow.pop %v492
    %v494 = vmul.f32 %v449, 1.442695
    %v495 = vpow.pop %v494
    %v496 = vmul.f32 %v450, 1.442695
    %v497 = vpow.pop %v496
    %v498 = vmul.f32 %v451, 1.442695
    %v499 = vpow.pop %v498
    %v500 = vmul.f32 %v452, 1.442695
    %v501 = vpow.pop %v500
    %v502 = vmul.f32 %v453, 1.442695
    %v503 = vpow.pop %v502
    %v504 = vmul.f32 %v454, 1.442695
    %v505 = vpow.pop %v504
    %v506 = vmul.f32 %v455, 1.442695
    %v507 = vpow.pop %v506
    %v508 = vmul.f32 %v456, 1.442695
    %v509 = vpow.pop %v508
    %v510 = vmul.f32 %v457, 1.442695
    %v511 = vpow.pop %v510
    %v512 = vmul.f32 %v458, 1.442695
    %v513 = vpow.pop %v512
    %v514 = vmul.f32 %v459, 1.442695
    %v515 = vpow.pop %v514
    %v516 = vmul.f32 %v460, 1.442695
    %v517 = vpow.pop %v516
    %v518 = vmul.f32 %v461, 1.442695
    %v519 = vpow.pop %v518
    %v520 = vmul.f32 %v462, 1.442695
    %v521 = vpow.pop %v520
    %v522 = vmul.f32 %v463, 1.442695
    %v523 = vpow.pop %v522
    %v524 = vmul.f32 %v464, 1.442695
    %v525 = vpow.pop %v524
    %v526 = vmul.f32 %v465, 1.442695
    %v527 = vpow.pop %v526
    %v528 = vmul.f32 %v466, 1.442695
    %v529 = vpow.pop %v528
    %v530 = vmul.f32 %v467, 1.442695
    %v531 = vpow.pop %v530
    %v532 = vadd.f32 %v469, 1.0
    %v533 = vadd.f32 %v471, 1.0
    %v534 = vadd.f32 %v473, 1.0
    %v535 = vadd.f32 %v475, 1.0
    %v536 = vadd.f32 %v477, 1.0
    %v537 = vadd.f32 %v479, 1.0
    %v538 = vadd.f32 %v481, 1.0
    %v539 = vadd.f32 %v483, 1.0
    %v540 = vadd.f32 %v485, 1.0
    %v541 = vadd.f32 %v487, 1.0
    %v542 = vadd.f32 %v489, 1.0
    %v543 = vadd.f32 %v491, 1.0
    %v544 = vadd.f32 %v493, 1.0
    %v545 = vadd.f32 %v495, 1.0
    %v546 = vadd.f32 %v497, 1.0
    %v547 = vadd.f32 %v499, 1.0
    %v548 = vadd.f32 %v501, 1.0
    %v549 = vadd.f32 %v503, 1.0
    %v550 = vadd.f32 %v505, 1.0
    %v551 = vadd.f32 %v507, 1.0
    %v552 = vadd.f32 %v509, 1.0
    %v553 = vadd.f32 %v511, 1.0
    %v554 = vadd.f32 %v513, 1.0
    %v555 = vadd.f32 %v515, 1.0
    %v556 = vadd.f32 %v517, 1.0
    %v557 = vadd.f32 %v519, 1.0
    %v558 = vadd.f32 %v521, 1.0
    %v559 = vadd.f32 %v523, 1.0
    %v560 = vadd.f32 %v525, 1.0
    %v561 = vadd.f32 %v527, 1.0
    %v562 = vadd.f32 %v529, 1.0
    %v563 = vadd.f32 %v531, 1.0
    %v564 = vrcp.pop %v532
    %v565 = vmul.f32 %v532, %v564
    %v566 = vsub.f32 1.0, %v565
    %v567 = vmul.f32 %v564, %v566
    %v568 = vadd.f32 %v564, %v567
    %vm569 = vweird.f32 %v532
    %vm570 = vweird.f32 %v564
    %vm571 = vmor %vm569, %vm570
    %v572 = vsel %vm571, %v564, %v568
    %v573 = vand.u32 2147483647, %v532
    %vm574 = vcmp.eq.f32.partialorder %v573, 8.507059e+37
    %v575 = vand.u32 %v532, 2147483648
    %v576 = vor.u32 1.1754944e-38, %v575
    %v577 = vsel %vm574, %v576, %v572
    %v578 = vmul.f32 1.0, %v577
    %v579 = vrcp.pop %v533
    %v580 = vmul.f32 %v533, %v579
    %v581 = vsub.f32 1.0, %v580
    %v582 = vmul.f32 %v579, %v581
    %v583 = vadd.f32 %v579, %v582
    %vm584 = vweird.f32 %v533
    %vm585 = vweird.f32 %v579
    %vm586 = vmor %vm584, %vm585
    %v587 = vsel %vm586, %v579, %v583
    %v588 = vand.u32 2147483647, %v533
    %vm589 = vcmp.eq.f32.partialorder %v588, 8.507059e+37
    %v590 = vand.u32 %v533, 2147483648
    %v591 = vor.u32 1.1754944e-38, %v590
    %v592 = vsel %vm589, %v591, %v587
    %v593 = vmul.f32 1.0, %v592
    %v594 = vrcp.pop %v534
    %v595 = vmul.f32 %v534, %v594
    %v596 = vsub.f32 1.0, %v595
    %v597 = vmul.f32 %v594, %v596
    %v598 = vadd.f32 %v594, %v597
    %vm599 = vweird.f32 %v534
    %vm600 = vweird.f32 %v594
    %vm601 = vmor %vm599, %vm600
    %v602 = vsel %vm601, %v594, %v598
    %v603 = vand.u32 2147483647, %v534
    %vm604 = vcmp.eq.f32.partialorder %v603, 8.507059e+37
    %v605 = vand.u32 %v534, 2147483648
    %v606 = vor.u32 1.1754944e-38, %v605
    %v607 = vsel %vm604, %v606, %v602
    %v608 = vmul.f32 1.0, %v607
    %v609 = vrcp.pop %v535
    %v610 = vmul.f32 %v535, %v609
    %v611 = vsub.f32 1.0, %v610
    %v612 = vmul.f32 %v609, %v611
    %v613 = vadd.f32 %v609, %v612
    %vm614 = vweird.f32 %v535
    %vm615 = vweird.f32 %v609
    %vm616 = vmor %vm614, %vm615
    %v617 = vsel %vm616, %v609, %v613
    %v618 = vand.u32 2147483647, %v535
    %vm619 = vcmp.eq.f32.partialorder %v618, 8.507059e+37
    %v620 = vand.u32 %v535, 2147483648
    %v621 = vor.u32 1.1754944e-38, %v620
    %v622 = vsel %vm619, %v621, %v617
    %v623 = vmul.f32 1.0, %v622
    %v624 = vrcp.pop %v536
    %v625 = vmul.f32 %v536, %v624
    %v626 = vsub.f32 1.0, %v625
    %v627 = vmul.f32 %v624, %v626
    %v628 = vadd.f32 %v624, %v627
    %vm629 = vweird.f32 %v536
    %vm630 = vweird.f32 %v624
    %vm631 = vmor %vm629, %vm630
    %v632 = vsel %vm631, %v624, %v628
    %v633 = vand.u32 2147483647, %v536
    %vm634 = vcmp.eq.f32.partialorder %v633, 8.507059e+37
    %v635 = vand.u32 %v536, 2147483648
    %v636 = vor.u32 1.1754944e-38, %v635
    %v637 = vsel %vm634, %v636, %v632
    %v638 = vmul.f32 1.0, %v637
    %v639 = vrcp.pop %v537
    %v640 = vmul.f32 %v537, %v639
    %v641 = vsub.f32 1.0, %v640
    %v642 = vmul.f32 %v639, %v641
    %v643 = vadd.f32 %v639, %v642
    %vm644 = vweird.f32 %v537
    %vm645 = vweird.f32 %v639
    %vm646 = vmor %vm644, %vm645
    %v647 = vsel %vm646, %v639, %v643
    %v648 = vand.u32 2147483647, %v537
    %vm649 = vcmp.eq.f32.partialorder %v648, 8.507059e+37
    %v650 = vand.u32 %v537, 2147483648
    %v651 = vor.u32 1.1754944e-38, %v650
    %v652 = vsel %vm649, %v651, %v647
    %v653 = vmul.f32 1.0, %v652
    %v654 = vrcp.pop %v538
    %v655 = vmul.f32 %v538, %v654
    %v656 = vsub.f32 1.0, %v655
    %v657 = vmul.f32 %v654, %v656
    %v658 = vadd.f32 %v654, %v657
    %vm659 = vweird.f32 %v538
    %vm660 = vweird.f32 %v654
    %vm661 = vmor %vm659, %vm660
    %v662 = vsel %vm661, %v654, %v658
    %v663 = vand.u32 2147483647, %v538
    %vm664 = vcmp.eq.f32.partialorder %v663, 8.507059e+37
    %v665 = vand.u32 %v538, 2147483648
    %v666 = vor.u32 1.1754944e-38, %v665
    %v667 = vsel %vm664, %v666, %v662
    %v668 = vmul.f32 1.0, %v667
    %v669 = vrcp.pop %v539
    %v670 = vmul.f32 %v539, %v669
    %v671 = vsub.f32 1.0, %v670
    %v672 = vmul.f32 %v669, %v671
    %v673 = vadd.f32 %v669, %v672
    %vm674 = vweird.f32 %v539
    %vm675 = vweird.f32 %v669
    %vm676 = vmor %vm674, %vm675
    %v677 = vsel %vm676, %v669, %v673
    %v678 = vand.u32 2147483647, %v539
    %vm679 = vcmp.eq.f32.partialorder %v678, 8.507059e+37
    %v680 = vand.u32 %v539, 2147483648
    %v681 = vor.u32 1.1754944e-38, %v680
    %v682 = vsel %vm679, %v681, %v677
    %v683 = vmul.f32 1.0, %v682
    %v684 = vrcp.pop %v540
    %v685 = vmul.f32 %v540, %v684
    %v686 = vsub.f32 1.0, %v685
    %v687 = vmul.f32 %v684, %v686
    %v688 = vadd.f32 %v684, %v687
    %vm689 = vweird.f32 %v540
    %vm690 = vweird.f32 %v684
    %vm691 = vmor %vm689, %vm690
    %v692 = vsel %vm691, %v684, %v688
    %v693 = vand.u32 2147483647, %v540
    %vm694 = vcmp.eq.f32.partialorder %v693, 8.507059e+37
    %v695 = vand.u32 %v540, 2147483648
    %v696 = vor.u32 1.1754944e-38, %v695
    %v697 = vsel %vm694, %v696, %v692
    %v698 = vmul.f32 1.0, %v697
    %v699 = vrcp.pop %v541
    %v700 = vmul.f32 %v541, %v699
    %v701 = vsub.f32 1.0, %v700
    %v702 = vmul.f32 %v699, %v701
    %v703 = vadd.f32 %v699, %v702
    %vm704 = vweird.f32 %v541
    %vm705 = vweird.f32 %v699
    %vm706 = vmor %vm704, %vm705
    %v707 = vsel %vm706, %v699, %v703
    %v708 = vand.u32 2147483647, %v541
    %vm709 = vcmp.eq.f32.partialorder %v708, 8.507059e+37
    %v710 = vand.u32 %v541, 2147483648
    %v711 = vor.u32 1.1754944e-38, %v710
    %v712 = vsel %vm709, %v711, %v707
    %v713 = vmul.f32 1.0, %v712
    %v714 = vrcp.pop %v542
    %v715 = vmul.f32 %v542, %v714
    %v716 = vsub.f32 1.0, %v715
    %v717 = vmul.f32 %v714, %v716
    %v718 = vadd.f32 %v714, %v717
    %vm719 = vweird.f32 %v542
    %vm720 = vweird.f32 %v714
    %vm721 = vmor %vm719, %vm720
    %v722 = vsel %vm721, %v714, %v718
    %v723 = vand.u32 2147483647, %v542
    %vm724 = vcmp.eq.f32.partialorder %v723, 8.507059e+37
    %v725 = vand.u32 %v542, 2147483648
    %v726 = vor.u32 1.1754944e-38, %v725
    %v727 = vsel %vm724, %v726, %v722
    %v728 = vmul.f32 1.0, %v727
    %v729 = vrcp.pop %v543
    %v730 = vmul.f32 %v543, %v729
    %v731 = vsub.f32 1.0, %v730
    %v732 = vmul.f32 %v729, %v731
    %v733 = vadd.f32 %v729, %v732
    %vm734 = vweird.f32 %v543
    %vm735 = vweird.f32 %v729
    %vm736 = vmor %vm734, %vm735
    %v737 = vsel %vm736, %v729, %v733
    %v738 = vand.u32 2147483647, %v543
    %vm739 = vcmp.eq.f32.partialorder %v738, 8.507059e+37
    %v740 = vand.u32 %v543, 2147483648
    %v741 = vor.u32 1.1754944e-38, %v740
    %v742 = vsel %vm739, %v741, %v737
    %v743 = vmul.f32 1.0, %v742
    %v744 = vrcp.pop %v544
    %v745 = vmul.f32 %v544, %v744
    %v746 = vsub.f32 1.0, %v745
    %v747 = vmul.f32 %v744, %v746
    %v748 = vadd.f32 %v744, %v747
    %vm749 = vweird.f32 %v544
    %vm750 = vweird.f32 %v744
    %vm751 = vmor %vm749, %vm750
    %v752 = vsel %vm751, %v744, %v748
    %v753 = vand.u32 2147483647, %v544
    %vm754 = vcmp.eq.f32.partialorder %v753, 8.507059e+37
    %v755 = vand.u32 %v544, 2147483648
    %v756 = vor.u32 1.1754944e-38, %v755
    %v757 = vsel %vm754, %v756, %v752
    %v758 = vmul.f32 1.0, %v757
    %v759 = vrcp.pop %v545
    %v760 = vmul.f32 %v545, %v759
    %v761 = vsub.f32 1.0, %v760
    %v762 = vmul.f32 %v759, %v761
    %v763 = vadd.f32 %v759, %v762
    %vm764 = vweird.f32 %v545
    %vm765 = vweird.f32 %v759
    %vm766 = vmor %vm764, %vm765
    %v767 = vsel %vm766, %v759, %v763
    %v768 = vand.u32 2147483647, %v545
    %vm769 = vcmp.eq.f32.partialorder %v768, 8.507059e+37
    %v770 = vand.u32 %v545, 2147483648
    %v771 = vor.u32 1.1754944e-38, %v770
    %v772 = vsel %vm769, %v771, %v767
    %v773 = vmul.f32 1.0, %v772
    %v774 = vrcp.pop %v546
    %v775 = vmul.f32 %v546, %v774
    %v776 = vsub.f32 1.0, %v775
    %v777 = vmul.f32 %v774, %v776
    %v778 = vadd.f32 %v774, %v777
    %vm779 = vweird.f32 %v546
    %vm780 = vweird.f32 %v774
    %vm781 = vmor %vm779, %vm780
    %v782 = vsel %vm781, %v774, %v778
    %v783 = vand.u32 2147483647, %v546
    %vm784 = vcmp.eq.f32.partialorder %v783, 8.507059e+37
    %v785 = vand.u32 %v546, 2147483648
    %v786 = vor.u32 1.1754944e-38, %v785
    %v787 = vsel %vm784, %v786, %v782
    %v788 = vmul.f32 1.0, %v787
    %v789 = vrcp.pop %v547
    %v790 = vmul.f32 %v547, %v789
    %v791 = vsub.f32 1.0, %v790
    %v792 = vmul.f32 %v789, %v791
    %v793 = vadd.f32 %v789, %v792
    %vm794 = vweird.f32 %v547
    %vm795 = vweird.f32 %v789
    %vm796 = vmor %vm794, %vm795
    %v797 = vsel %vm796, %v789, %v793
    %v798 = vand.u32 2147483647, %v547
    %vm799 = vcmp.eq.f32.partialorder %v798, 8.507059e+37
    %v800 = vand.u32 %v547, 2147483648
    %v801 = vor.u32 1.1754944e-38, %v800
    %v802 = vsel %vm799, %v801, %v797
    %v803 = vmul.f32 1.0, %v802
    %v804 = vrcp.pop %v548
    %v805 = vmul.f32 %v548, %v804
    %v806 = vsub.f32 1.0, %v805
    %v807 = vmul.f32 %v804, %v806
    %v808 = vadd.f32 %v804, %v807
    %vm809 = vweird.f32 %v548
    %vm810 = vweird.f32 %v804
    %vm811 = vmor %vm809, %vm810
    %v812 = vsel %vm811, %v804, %v808
    %v813 = vand.u32 2147483647, %v548
    %vm814 = vcmp.eq.f32.partialorder %v813, 8.507059e+37
    %v815 = vand.u32 %v548, 2147483648
    %v816 = vor.u32 1.1754944e-38, %v815
    %v817 = vsel %vm814, %v816, %v812
    %v818 = vmul.f32 1.0, %v817
    %v819 = vrcp.pop %v549
    %v820 = vmul.f32 %v549, %v819
    %v821 = vsub.f32 1.0, %v820
    %v822 = vmul.f32 %v819, %v821
    %v823 = vadd.f32 %v819, %v822
    %vm824 = vweird.f32 %v549
    %vm825 = vweird.f32 %v819
    %vm826 = vmor %vm824, %vm825
    %v827 = vsel %vm826, %v819, %v823
    %v828 = vand.u32 2147483647, %v549
    %vm829 = vcmp.eq.f32.partialorder %v828, 8.507059e+37
    %v830 = vand.u32 %v549, 2147483648
    %v831 = vor.u32 1.1754944e-38, %v830
    %v832 = vsel %vm829, %v831, %v827
    %v833 = vmul.f32 1.0, %v832
    %v834 = vrcp.pop %v550
    %v835 = vmul.f32 %v550, %v834
    %v836 = vsub.f32 1.0, %v835
    %v837 = vmul.f32 %v834, %v836
    %v838 = vadd.f32 %v834, %v837
    %vm839 = vweird.f32 %v550
    %vm840 = vweird.f32 %v834
    %vm841 = vmor %vm839, %vm840
    %v842 = vsel %vm841, %v834, %v838
    %v843 = vand.u32 2147483647, %v550
    %vm844 = vcmp.eq.f32.partialorder %v843, 8.507059e+37
    %v845 = vand.u32 %v550, 2147483648
    %v846 = vor.u32 1.1754944e-38, %v845
    %v847 = vsel %vm844, %v846, %v842
    %v848 = vmul.f32 1.0, %v847
    %v849 = vrcp.pop %v551
    %v850 = vmul.f32 %v551, %v849
    %v851 = vsub.f32 1.0, %v850
    %v852 = vmul.f32 %v849, %v851
    %v853 = vadd.f32 %v849, %v852
    %vm854 = vweird.f32 %v551
    %vm855 = vweird.f32 %v849
    %vm856 = vmor %vm854, %vm855
    %v857 = vsel %vm856, %v849, %v853
    %v858 = vand.u32 2147483647, %v551
    %vm859 = vcmp.eq.f32.partialorder %v858, 8.507059e+37
    %v860 = vand.u32 %v551, 2147483648
    %v861 = vor.u32 1.1754944e-38, %v860
    %v862 = vsel %vm859, %v861, %v857
    %v863 = vmul.f32 1.0, %v862
    %v864 = vrcp.pop %v552
    %v865 = vmul.f32 %v552, %v864
    %v866 = vsub.f32 1.0, %v865
    %v867 = vmul.f32 %v864, %v866
    %v868 = vadd.f32 %v864, %v867
    %vm869 = vweird.f32 %v552
    %vm870 = vweird.f32 %v864
    %vm871 = vmor %vm869, %vm870
    %v872 = vsel %vm871, %v864, %v868
    %v873 = vand.u32 2147483647, %v552
    %vm874 = vcmp.eq.f32.partialorder %v873, 8.507059e+37
    %v875 = vand.u32 %v552, 2147483648
    %v876 = vor.u32 1.1754944e-38, %v875
    %v877 = vsel %vm874, %v876, %v872
    %v878 = vmul.f32 1.0, %v877
    %v879 = vrcp.pop %v553
    %v880 = vmul.f32 %v553, %v879
    %v881 = vsub.f32 1.0, %v880
    %v882 = vmul.f32 %v879, %v881
    %v883 = vadd.f32 %v879, %v882
    %vm884 = vweird.f32 %v553
    %vm885 = vweird.f32 %v879
    %vm886 = vmor %vm884, %vm885
    %v887 = vsel %vm886, %v879, %v883
    %v888 = vand.u32 2147483647, %v553
    %vm889 = vcmp.eq.f32.partialorder %v888, 8.507059e+37
    %v890 = vand.u32 %v553, 2147483648
    %v891 = vor.u32 1.1754944e-38, %v890
    %v892 = vsel %vm889, %v891, %v887
    %v893 = vmul.f32 1.0, %v892
    %v894 = vrcp.pop %v554
    %v895 = vmul.f32 %v554, %v894
    %v896 = vsub.f32 1.0, %v895
    %v897 = vmul.f32 %v894, %v896
    %v898 = vadd.f32 %v894, %v897
    %vm899 = vweird.f32 %v554
    %vm900 = vweird.f32 %v894
    %vm901 = vmor %vm899, %vm900
    %v902 = vsel %vm901, %v894, %v898
    %v903 = vand.u32 2147483647, %v554
    %vm904 = vcmp.eq.f32.partialorder %v903, 8.507059e+37
    %v905 = vand.u32 %v554, 2147483648
    %v906 = vor.u32 1.1754944e-38, %v905
    %v907 = vsel %vm904, %v906, %v902
    %v908 = vmul.f32 1.0, %v907
    %v909 = vrcp.pop %v555
    %v910 = vmul.f32 %v555, %v909
    %v911 = vsub.f32 1.0, %v910
    %v912 = vmul.f32 %v909, %v911
    %v913 = vadd.f32 %v909, %v912
    %vm914 = vweird.f32 %v555
    %vm915 = vweird.f32 %v909
    %vm916 = vmor %vm914, %vm915
    %v917 = vsel %vm916, %v909, %v913
    %v918 = vand.u32 2147483647, %v555
    %vm919 = vcmp.eq.f32.partialorder %v918, 8.507059e+37
    %v920 = vand.u32 %v555, 2147483648
    %v921 = vor.u32 1.1754944e-38, %v920
    %v922 = vsel %vm919, %v921, %v917
    %v923 = vmul.f32 1.0, %v922
    %v924 = vrcp.pop %v556
    %v925 = vmul.f32 %v556, %v924
    %v926 = vsub.f32 1.0, %v925
    %v927 = vmul.f32 %v924, %v926
    %v928 = vadd.f32 %v924, %v927
    %vm929 = vweird.f32 %v556
    %vm930 = vweird.f32 %v924
    %vm931 = vmor %vm929, %vm930
    %v932 = vsel %vm931, %v924, %v928
    %v933 = vand.u32 2147483647, %v556
    %vm934 = vcmp.eq.f32.partialorder %v933, 8.507059e+37
    %v935 = vand.u32 %v556, 2147483648
    %v936 = vor.u32 1.1754944e-38, %v935
    %v937 = vsel %vm934, %v936, %v932
    %v938 = vmul.f32 1.0, %v937
    %v939 = vrcp.pop %v557
    %v940 = vmul.f32 %v557, %v939
    %v941 = vsub.f32 1.0, %v940
    %v942 = vmul.f32 %v939, %v941
    %v943 = vadd.f32 %v939, %v942
    %vm944 = vweird.f32 %v557
    %vm945 = vweird.f32 %v939
    %vm946 = vmor %vm944, %vm945
    %v947 = vsel %vm946, %v939, %v943
    %v948 = vand.u32 2147483647, %v557
    %vm949 = vcmp.eq.f32.partialorder %v948, 8.507059e+37
    %v950 = vand.u32 %v557, 2147483648
    %v951 = vor.u32 1.1754944e-38, %v950
    %v952 = vsel %vm949, %v951, %v947
    %v953 = vmul.f32 1.0, %v952
    %v954 = vrcp.pop %v558
    %v955 = vmul.f32 %v558, %v954
    %v956 = vsub.f32 1.0, %v955
    %v957 = vmul.f32 %v954, %v956
    %v958 = vadd.f32 %v954, %v957
    %vm959 = vweird.f32 %v558
    %vm960 = vweird.f32 %v954
    %vm961 = vmor %vm959, %vm960
    %v962 = vsel %vm961, %v954, %v958
    %v963 = vand.u32 2147483647, %v558
    %vm964 = vcmp.eq.f32.partialorder %v963, 8.507059e+37
    %v965 = vand.u32 %v558, 2147483648
    %v966 = vor.u32 1.1754944e-38, %v965
    %v967 = vsel %vm964, %v966, %v962
    %v968 = vmul.f32 1.0, %v967
    %v969 = vrcp.pop %v559
    %v970 = vmul.f32 %v559, %v969
    %v971 = vsub.f32 1.0, %v970
    %v972 = vmul.f32 %v969, %v971
    %v973 = vadd.f32 %v969, %v972
    %vm974 = vweird.f32 %v559
    %vm975 = vweird.f32 %v969
    %vm976 = vmor %vm974, %vm975
    %v977 = vsel %vm976, %v969, %v973
    %v978 = vand.u32 2147483647, %v559
    %vm979 = vcmp.eq.f32.partialorder %v978, 8.507059e+37
    %v980 = vand.u32 %v559, 2147483648
    %v981 = vor.u32 1.1754944e-38, %v980
    %v982 = vsel %vm979, %v981, %v977
    %v983 = vmul.f32 1.0, %v982
    %v984 = vrcp.pop %v560
    %v985 = vmul.f32 %v560, %v984
    %v986 = vsub.f32 1.0, %v985
    %v987 = vmul.f32 %v984, %v986
    %v988 = vadd.f32 %v984, %v987
    %vm989 = vweird.f32 %v560
    %vm990 = vweird.f32 %v984
    %vm991 = vmor %vm989, %vm990
    %v992 = vsel %vm991, %v984, %v988
    %v993 = vand.u32 2147483647, %v560
    %vm994 = vcmp.eq.f32.partialorder %v993, 8.507059e+37
    %v995 = vand.u32 %v560, 2147483648
    %v996 = vor.u32 1.1754944e-38, %v995
    %v997 = vsel %vm994, %v996, %v992
    %v998 = vmul.f32 1.0, %v997
    %v999 = vrcp.pop %v561
    %v1000 = vmul.f32 %v561, %v999
    %v1001 = vsub.f32 1.0, %v1000
    %v1002 = vmul.f32 %v999, %v1001
    %v1003 = vadd.f32 %v999, %v1002
    %vm1004 = vweird.f32 %v561
    %vm1005 = vweird.f32 %v999
    %vm1006 = vmor %vm1004, %vm1005
    %v1007 = vsel %vm1006, %v999, %v1003
    %v1008 = vand.u32 2147483647, %v561
    %vm1009 = vcmp.eq.f32.partialorder %v1008, 8.507059e+37
    %v1010 = vand.u32 %v561, 2147483648
    %v1011 = vor.u32 1.1754944e-38, %v1010
    %v1012 = vsel %vm1009, %v1011, %v1007
    %v1013 = vmul.f32 1.0, %v1012
    %v1014 = vrcp.pop %v562
    %v1015 = vmul.f32 %v562, %v1014
    %v1016 = vsub.f32 1.0, %v1015
    %v1017 = vmul.f32 %v1014, %v1016
    %v1018 = vadd.f32 %v1014, %v1017
    %vm1019 = vweird.f32 %v562
    %vm1020 = vweird.f32 %v1014
    %vm1021 = vmor %vm1019, %vm1020
    %v1022 = vsel %vm1021, %v1014, %v1018
    %v1023 = vand.u32 2147483647, %v562
    %vm1024 = vcmp.eq.f32.partialorder %v1023, 8.507059e+37
    %v1025 = vand.u32 %v562, 2147483648
    %v1026 = vor.u32 1.1754944e-38, %v1025
    %v1027 = vsel %vm1024, %v1026, %v1022
    %v1028 = vmul.f32 1.0, %v1027
    %v1029 = vrcp.pop %v563
    %v1030 = vmul.f32 %v563, %v1029
    %v1031 = vsub.f32 1.0, %v1030
    %v1032 = vmul.f32 %v1029, %v1031
    %v1033 = vadd.f32 %v1029, %v1032
    %vm1034 = vweird.f32 %v563
    %vm1035 = vweird.f32 %v1029
    %vm1036 = vmor %vm1034, %vm1035
    %v1037 = vsel %vm1036, %v1029, %v1033
    %v1038 = vand.u32 2147483647, %v563
    %vm1039 = vcmp.eq.f32.partialorder %v1038, 8.507059e+37
    %v1040 = vand.u32 %v563, 2147483648
    %v1041 = vor.u32 1.1754944e-38, %v1040
    %v1042 = vsel %vm1039, %v1041, %v1037
    %v1043 = vmul.f32 1.0, %v1042
    %v1044 = vpack.c.bf16 %v593, %v578
    %v1045 = vpack.c.bf16 %v623, %v608
    %v1046 = vpack.c.bf16 %v653, %v638
    %v1047 = vpack.c.bf16 %v683, %v668
    %v1048 = vpack.c.bf16 %v713, %v698
    %v1049 = vpack.c.bf16 %v743, %v728
    %v1050 = vpack.c.bf16 %v773, %v758
    %v1051 = vpack.c.bf16 %v803, %v788
    %v1052 = vpack.c.bf16 %v833, %v818
    %v1053 = vpack.c.bf16 %v863, %v848
    %v1054 = vpack.c.bf16 %v893, %v878
    %v1055 = vpack.c.bf16 %v923, %v908
    %v1056 = vpack.c.bf16 %v953, %v938
    %v1057 = vpack.c.bf16 %v983, %v968
    %v1058 = vpack.c.bf16 %v1013, %v998
    %v1059 = vpack.c.bf16 %v1043, %v1028
    %v1060 = vld [vmem:[%s5] sm:$0xf]
    %v1061 = vld [vmem:[%s5 + $0x4] sm:$0xf]
    %v1062 = vld [vmem:[%s5 + $0x8] sm:$0xf]
    %v1063 = vld [vmem:[%s5 + $0xc] sm:$0xf]
    %v1064 = vld [vmem:[%s5 + $0x10] sm:$0xf]
    %v1065 = vld [vmem:[%s5 + $0x14] sm:$0xf]
    %v1066 = vld [vmem:[%s5 + $0x18] sm:$0xf]
    %v1067 = vld [vmem:[%s5 + $0x1c] sm:$0xf]
    %v1068 = vld [vmem:[%s6] sm:$0x1]
    %v1070 = vperm.slane %v1068, 0
    %v1080 = vunpack.c.l.b16 %v1060
    %v1081 = vunpack.c.l.b16 %v1061
    %v1082 = vunpack.c.l.b16 %v1062
    %v1083 = vunpack.c.l.b16 %v1063
    %v1084 = vunpack.c.l.b16 %v1064
    %v1085 = vunpack.c.l.b16 %v1065
    %v1086 = vunpack.c.l.b16 %v1066
    %v1087 = vunpack.c.l.b16 %v1067
    %v1088 = vpack.c.b16 %v1081, %v1080
    %v1089 = vpack.c.b16 %v1083, %v1082
    %v1090 = vpack.c.b16 %v1085, %v1084
    %v1091 = vpack.c.b16 %v1087, %v1086
    %vm1096 = vcmask 523264
    %v1098 = vsel %vm1096, %v1044, 0
    %v1101 = vsel %vm1096, %v1045, 0
    %v1104 = vsel %vm1096, %v1046, 0
    %v1107 = vsel %vm1096, %v1047, 0
    %v1110 = vsel %vm1096, %v1048, 0
    %v1113 = vsel %vm1096, %v1049, 0
    %v1116 = vsel %vm1096, %v1050, 0
    %v1119 = vsel %vm1096, %v1051, 0
    %v1122 = vsel %vm1096, %v1052, 0
    %v1125 = vsel %vm1096, %v1053, 0
    %v1128 = vsel %vm1096, %v1054, 0
    %v1131 = vsel %vm1096, %v1055, 0
    %v1134 = vsel %vm1096, %v1056, 0
    %v1137 = vsel %vm1096, %v1057, 0
    %v1140 = vsel %vm1096, %v1058, 0
    %v1143 = vsel %vm1096, %v1059, 0
    %1145 = vmatpush.bf16.msra.mxu0 0
    %1146 = vmatpush.bf16.msra.mxu0 0
    %1147 = vmatpush.bf16.msra.mxu0 0
    %1148 = vmatpush.bf16.msra.mxu0 0
    %1149 = vmatpush.bf16.msra.mxu0 %v1091
    %1150 = vmatpush.bf16.msra.mxu0 %v1090
    %1151 = vmatpush.bf16.msra.mxu0 %v1089
    %1152 = vmatpush.bf16.msra.mxu0 %v1088
    %1153 = vmatmul.bf16.gmra.mxu0 %v1098
    %v1154 = vpop.f32.mrf.mxu0
    %v1155 = vadd.f32 %v1070, %v1154
    %v1156 = vpop.f32.mrf.mxu0
    %v1157 = vadd.f32 %v1070, %v1156
    %1158 = vmatmul.bf16.gmra.mxu0 %v1101
    %v1159 = vpop.f32.mrf.mxu0
    %v1160 = vadd.f32 %v1070, %v1159
    %v1161 = vpop.f32.mrf.mxu0
    %v1162 = vadd.f32 %v1070, %v1161
    %1163 = vmatmul.bf16.gmra.mxu0 %v1104
    %v1164 = vpop.f32.mrf.mxu0
    %v1165 = vadd.f32 %v1070, %v1164
    %v1166 = vpop.f32.mrf.mxu0
    %v1167 = vadd.f32 %v1070, %v1166
    %1168 = vmatmul.bf16.gmra.mxu0 %v1107
    %v1169 = vpop.f32.mrf.mxu0
    %v1170 = vadd.f32 %v1070, %v1169
    %v1171 = vpop.f32.mrf.mxu0
    %v1172 = vadd.f32 %v1070, %v1171
    %1173 = vmatmul.bf16.gmra.mxu0 %v1110
    %v1174 = vpop.f32.mrf.mxu0
    %v1175 = vadd.f32 %v1070, %v1174
    %v1176 = vpop.f32.mrf.mxu0
    %v1177 = vadd.f32 %v1070, %v1176
    %1178 = vmatmul.bf16.gmra.mxu0 %v1113
    %v1179 = vpop.f32.mrf.mxu0
    %v1180 = vadd.f32 %v1070, %v1179
    %v1181 = vpop.f32.mrf.mxu0
    %v1182 = vadd.f32 %v1070, %v1181
    %1183 = vmatmul.bf16.gmra.mxu0 %v1116
    %v1184 = vpop.f32.mrf.mxu0
    %v1185 = vadd.f32 %v1070, %v1184
    %v1186 = vpop.f32.mrf.mxu0
    %v1187 = vadd.f32 %v1070, %v1186
    %1188 = vmatmul.bf16.gmra.mxu0 %v1119
    %v1189 = vpop.f32.mrf.mxu0
    %v1190 = vadd.f32 %v1070, %v1189
    %v1191 = vpop.f32.mrf.mxu0
    %v1192 = vadd.f32 %v1070, %v1191
    %1193 = vmatmul.bf16.gmra.mxu0 %v1122
    %v1194 = vpop.f32.mrf.mxu0
    %v1195 = vadd.f32 %v1070, %v1194
    %v1196 = vpop.f32.mrf.mxu0
    %v1197 = vadd.f32 %v1070, %v1196
    %1198 = vmatmul.bf16.gmra.mxu0 %v1125
    %v1199 = vpop.f32.mrf.mxu0
    %v1200 = vadd.f32 %v1070, %v1199
    %v1201 = vpop.f32.mrf.mxu0
    %v1202 = vadd.f32 %v1070, %v1201
    %1203 = vmatmul.bf16.gmra.mxu0 %v1128
    %v1204 = vpop.f32.mrf.mxu0
    %v1205 = vadd.f32 %v1070, %v1204
    %v1206 = vpop.f32.mrf.mxu0
    %v1207 = vadd.f32 %v1070, %v1206
    %1208 = vmatmul.bf16.gmra.mxu0 %v1131
    %v1209 = vpop.f32.mrf.mxu0
    %v1210 = vadd.f32 %v1070, %v1209
    %v1211 = vpop.f32.mrf.mxu0
    %v1212 = vadd.f32 %v1070, %v1211
    %1213 = vmatmul.bf16.gmra.mxu0 %v1134
    %v1214 = vpop.f32.mrf.mxu0
    %v1215 = vadd.f32 %v1070, %v1214
    %v1216 = vpop.f32.mrf.mxu0
    %v1217 = vadd.f32 %v1070, %v1216
    %1218 = vmatmul.bf16.gmra.mxu0 %v1137
    %v1219 = vpop.f32.mrf.mxu0
    %v1220 = vadd.f32 %v1070, %v1219
    %v1221 = vpop.f32.mrf.mxu0
    %v1222 = vadd.f32 %v1070, %v1221
    %1223 = vmatmul.bf16.gmra.mxu0 %v1140
    %v1224 = vpop.f32.mrf.mxu0
    %v1225 = vadd.f32 %v1070, %v1224
    %v1226 = vpop.f32.mrf.mxu0
    %v1227 = vadd.f32 %v1070, %v1226
    %1228 = vmatmul.bf16.gmra.mxu0 %v1143
    %v1229 = vpop.f32.mrf.mxu0
    %v1230 = vadd.f32 %v1070, %v1229
    %v1231 = vpop.f32.mrf.mxu0
    %v1232 = vadd.f32 %v1070, %v1231
    %1233 = vdwg.mxu0
    %v1234 = vtanh.pop %v1155
    %v1235 = vtanh.pop %v1157
    %v1236 = vtanh.pop %v1160
    %v1237 = vtanh.pop %v1162
    %v1238 = vtanh.pop %v1165
    %v1239 = vtanh.pop %v1167
    %v1240 = vtanh.pop %v1170
    %v1241 = vtanh.pop %v1172
    %v1242 = vtanh.pop %v1175
    %v1243 = vtanh.pop %v1177
    %v1244 = vtanh.pop %v1180
    %v1245 = vtanh.pop %v1182
    %v1246 = vtanh.pop %v1185
    %v1247 = vtanh.pop %v1187
    %v1248 = vtanh.pop %v1190
    %v1249 = vtanh.pop %v1192
    %v1250 = vtanh.pop %v1195
    %v1251 = vtanh.pop %v1197
    %v1252 = vtanh.pop %v1200
    %v1253 = vtanh.pop %v1202
    %v1254 = vtanh.pop %v1205
    %v1255 = vtanh.pop %v1207
    %v1256 = vtanh.pop %v1210
    %v1257 = vtanh.pop %v1212
    %v1258 = vtanh.pop %v1215
    %v1259 = vtanh.pop %v1217
    %v1260 = vtanh.pop %v1220
    %v1261 = vtanh.pop %v1222
    %v1262 = vtanh.pop %v1225
    %v1263 = vtanh.pop %v1227
    %v1264 = vtanh.pop %v1230
    %v1265 = vtanh.pop %v1232
    %v1266 = vld [vmem:[%s7] sm:$0x1]
    %v1268 = vperm.slane %v1266, 0
    %v1270 = vmul.f32 %v1234, %v1268
    %v1271 = vmul.f32 %v1235, %v1268
    %v1272 = vmul.f32 %v1236, %v1268
    %v1273 = vmul.f32 %v1237, %v1268
    %v1274 = vmul.f32 %v1238, %v1268
    %v1275 = vmul.f32 %v1239, %v1268
    %v1276 = vmul.f32 %v1240, %v1268
    %v1277 = vmul.f32 %v1241, %v1268
    %v1278 = vmul.f32 %v1242, %v1268
    %v1279 = vmul.f32 %v1243, %v1268
    %v1280 = vmul.f32 %v1244, %v1268
    %v1281 = vmul.f32 %v1245, %v1268
    %v1282 = vmul.f32 %v1246, %v1268
    %v1283 = vmul.f32 %v1247, %v1268
    %v1284 = vmul.f32 %v1248, %v1268
    %v1285 = vmul.f32 %v1249, %v1268
    %v1286 = vmul.f32 %v1250, %v1268
    %v1287 = vmul.f32 %v1251, %v1268
    %v1288 = vmul.f32 %v1252, %v1268
    %v1289 = vmul.f32 %v1253, %v1268
    %v1290 = vmul.f32 %v1254, %v1268
    %v1291 = vmul.f32 %v1255, %v1268
    %v1292 = vmul.f32 %v1256, %v1268
    %v1293 = vmul.f32 %v1257, %v1268
    %v1294 = vmul.f32 %v1258, %v1268
    %v1295 = vmul.f32 %v1259, %v1268
    %v1296 = vmul.f32 %v1260, %v1268
    %v1297 = vmul.f32 %v1261, %v1268
    %v1298 = vmul.f32 %v1262, %v1268
    %v1299 = vmul.f32 %v1263, %v1268
    %v1300 = vmul.f32 %v1264, %v1268
    %v1301 = vmul.f32 %v1265, %v1268
    %vm1302 = vcmask 261120
    %v1303 = vsel %vm1302, %v1270, 0.0
    %1304 = vadd.xlane.f32.xlu0 %v1303
    %v1305 = vpop.xlane.xlu0 %1304
    %v1306 = vsel %vm1302, %v1271, 0.0
    %1307 = vadd.xlane.f32.xlu0 %v1306
    %v1308 = vpop.xlane.xlu0 %1307
    %v1309 = vsel %vm1302, %v1272, 0.0
    %1310 = vadd.xlane.f32.xlu0 %v1309
    %v1311 = vpop.xlane.xlu0 %1310
    %v1312 = vsel %vm1302, %v1273, 0.0
    %1313 = vadd.xlane.f32.xlu0 %v1312
    %v1314 = vpop.xlane.xlu0 %1313
    %v1315 = vsel %vm1302, %v1274, 0.0
    %1316 = vadd.xlane.f32.xlu0 %v1315
    %v1317 = vpop.xlane.xlu0 %1316
    %v1318 = vsel %vm1302, %v1275, 0.0
    %1319 = vadd.xlane.f32.xlu0 %v1318
    %v1320 = vpop.xlane.xlu0 %1319
    %v1321 = vsel %vm1302, %v1276, 0.0
    %1322 = vadd.xlane.f32.xlu0 %v1321
    %v1323 = vpop.xlane.xlu0 %1322
    %v1324 = vsel %vm1302, %v1277, 0.0
    %1325 = vadd.xlane.f32.xlu0 %v1324
    %v1326 = vpop.xlane.xlu0 %1325
    %v1327 = vsel %vm1302, %v1278, 0.0
    %1328 = vadd.xlane.f32.xlu0 %v1327
    %v1329 = vpop.xlane.xlu0 %1328
    %v1330 = vsel %vm1302, %v1279, 0.0
    %1331 = vadd.xlane.f32.xlu0 %v1330
    %v1332 = vpop.xlane.xlu0 %1331
    %v1333 = vsel %vm1302, %v1280, 0.0
    %1334 = vadd.xlane.f32.xlu0 %v1333
    %v1335 = vpop.xlane.xlu0 %1334
    %v1336 = vsel %vm1302, %v1281, 0.0
    %1337 = vadd.xlane.f32.xlu0 %v1336
    %v1338 = vpop.xlane.xlu0 %1337
    %v1339 = vsel %vm1302, %v1282, 0.0
    %1340 = vadd.xlane.f32.xlu0 %v1339
    %v1341 = vpop.xlane.xlu0 %1340
    %v1342 = vsel %vm1302, %v1283, 0.0
    %1343 = vadd.xlane.f32.xlu0 %v1342
    %v1344 = vpop.xlane.xlu0 %1343
    %v1345 = vsel %vm1302, %v1284, 0.0
    %1346 = vadd.xlane.f32.xlu0 %v1345
    %v1347 = vpop.xlane.xlu0 %1346
    %v1348 = vsel %vm1302, %v1285, 0.0
    %1349 = vadd.xlane.f32.xlu0 %v1348
    %v1350 = vpop.xlane.xlu0 %1349
    %v1351 = vsel %vm1302, %v1286, 0.0
    %1352 = vadd.xlane.f32.xlu0 %v1351
    %v1353 = vpop.xlane.xlu0 %1352
    %v1354 = vsel %vm1302, %v1287, 0.0
    %1355 = vadd.xlane.f32.xlu0 %v1354
    %v1356 = vpop.xlane.xlu0 %1355
    %v1357 = vsel %vm1302, %v1288, 0.0
    %1358 = vadd.xlane.f32.xlu0 %v1357
    %v1359 = vpop.xlane.xlu0 %1358
    %v1360 = vsel %vm1302, %v1289, 0.0
    %1361 = vadd.xlane.f32.xlu0 %v1360
    %v1362 = vpop.xlane.xlu0 %1361
    %v1363 = vsel %vm1302, %v1290, 0.0
    %1364 = vadd.xlane.f32.xlu0 %v1363
    %v1365 = vpop.xlane.xlu0 %1364
    %v1366 = vsel %vm1302, %v1291, 0.0
    %1367 = vadd.xlane.f32.xlu0 %v1366
    %v1368 = vpop.xlane.xlu0 %1367
    %v1369 = vsel %vm1302, %v1292, 0.0
    %1370 = vadd.xlane.f32.xlu0 %v1369
    %v1371 = vpop.xlane.xlu0 %1370
    %v1372 = vsel %vm1302, %v1293, 0.0
    %1373 = vadd.xlane.f32.xlu0 %v1372
    %v1374 = vpop.xlane.xlu0 %1373
    %v1375 = vsel %vm1302, %v1294, 0.0
    %1376 = vadd.xlane.f32.xlu0 %v1375
    %v1377 = vpop.xlane.xlu0 %1376
    %v1378 = vsel %vm1302, %v1295, 0.0
    %1379 = vadd.xlane.f32.xlu0 %v1378
    %v1380 = vpop.xlane.xlu0 %1379
    %v1381 = vsel %vm1302, %v1296, 0.0
    %1382 = vadd.xlane.f32.xlu0 %v1381
    %v1383 = vpop.xlane.xlu0 %1382
    %v1384 = vsel %vm1302, %v1297, 0.0
    %1385 = vadd.xlane.f32.xlu0 %v1384
    %v1386 = vpop.xlane.xlu0 %1385
    %v1387 = vsel %vm1302, %v1298, 0.0
    %1388 = vadd.xlane.f32.xlu0 %v1387
    %v1389 = vpop.xlane.xlu0 %1388
    %v1390 = vsel %vm1302, %v1299, 0.0
    %1391 = vadd.xlane.f32.xlu0 %v1390
    %v1392 = vpop.xlane.xlu0 %1391
    %v1393 = vsel %vm1302, %v1300, 0.0
    %1394 = vadd.xlane.f32.xlu0 %v1393
    %v1395 = vpop.xlane.xlu0 %1394
    %v1396 = vsel %vm1302, %v1301, 0.0
    %1397 = vadd.xlane.f32.xlu0 %v1396
    %v1398 = vpop.xlane.xlu0 %1397
    %v1399 = vld [vmem:[#allocation2] sm:$0x1]
    %1401 = vset.pattern.permute.xlu0 0
    %1402 = vperm.xlu0 %1401, %v1399
    %v1403 = vpop.permute.xlu0 %1402
    %v1405 = vperm.slane %v1403, 0
    %v1406 = vadd.f32 %v1305, %v1405
    %v1407 = vadd.f32 %v1308, %v1405
    %v1408 = vadd.f32 %v1311, %v1405
    %v1409 = vadd.f32 %v1314, %v1405
    %v1410 = vadd.f32 %v1317, %v1405
    %v1411 = vadd.f32 %v1320, %v1405
    %v1412 = vadd.f32 %v1323, %v1405
    %v1413 = vadd.f32 %v1326, %v1405
    %v1414 = vadd.f32 %v1329, %v1405
    %v1415 = vadd.f32 %v1332, %v1405
    %v1416 = vadd.f32 %v1335, %v1405
    %v1417 = vadd.f32 %v1338, %v1405
    %v1418 = vadd.f32 %v1341, %v1405
    %v1419 = vadd.f32 %v1344, %v1405
    %v1420 = vadd.f32 %v1347, %v1405
    %v1421 = vadd.f32 %v1350, %v1405
    %v1422 = vadd.f32 %v1353, %v1405
    %v1423 = vadd.f32 %v1356, %v1405
    %v1424 = vadd.f32 %v1359, %v1405
    %v1425 = vadd.f32 %v1362, %v1405
    %v1426 = vadd.f32 %v1365, %v1405
    %v1427 = vadd.f32 %v1368, %v1405
    %v1428 = vadd.f32 %v1371, %v1405
    %v1429 = vadd.f32 %v1374, %v1405
    %v1430 = vadd.f32 %v1377, %v1405
    %v1431 = vadd.f32 %v1380, %v1405
    %v1432 = vadd.f32 %v1383, %v1405
    %v1433 = vadd.f32 %v1386, %v1405
    %v1434 = vadd.f32 %v1389, %v1405
    %v1435 = vadd.f32 %v1392, %v1405
    %v1436 = vadd.f32 %v1395, %v1405
    %v1437 = vadd.f32 %v1398, %v1405
    %v1438 = vxor.u32 %v1406, 2147483648
    %v1439 = vxor.u32 %v1407, 2147483648
    %v1440 = vxor.u32 %v1408, 2147483648
    %v1441 = vxor.u32 %v1409, 2147483648
    %v1442 = vxor.u32 %v1410, 2147483648
    %v1443 = vxor.u32 %v1411, 2147483648
    %v1444 = vxor.u32 %v1412, 2147483648
    %v1445 = vxor.u32 %v1413, 2147483648
    %v1446 = vxor.u32 %v1414, 2147483648
    %v1447 = vxor.u32 %v1415, 2147483648
    %v1448 = vxor.u32 %v1416, 2147483648
    %v1449 = vxor.u32 %v1417, 2147483648
    %v1450 = vxor.u32 %v1418, 2147483648
    %v1451 = vxor.u32 %v1419, 2147483648
    %v1452 = vxor.u32 %v1420, 2147483648
    %v1453 = vxor.u32 %v1421, 2147483648
    %v1454 = vxor.u32 %v1422, 2147483648
    %v1455 = vxor.u32 %v1423, 2147483648
    %v1456 = vxor.u32 %v1424, 2147483648
    %v1457 = vxor.u32 %v1425, 2147483648
    %v1458 = vxor.u32 %v1426, 2147483648
    %v1459 = vxor.u32 %v1427, 2147483648
    %v1460 = vxor.u32 %v1428, 2147483648
    %v1461 = vxor.u32 %v1429, 2147483648
    %v1462 = vxor.u32 %v1430, 2147483648
    %v1463 = vxor.u32 %v1431, 2147483648
    %v1464 = vxor.u32 %v1432, 2147483648
    %v1465 = vxor.u32 %v1433, 2147483648
    %v1466 = vxor.u32 %v1434, 2147483648
    %v1467 = vxor.u32 %v1435, 2147483648
    %v1468 = vxor.u32 %v1436, 2147483648
    %v1469 = vxor.u32 %v1437, 2147483648
    %v1470 = vmul.f32 %v1438, 1.442695
    %v1471 = vpow.pop %v1470
    %v1472 = vmul.f32 %v1439, 1.442695
    %v1473 = vpow.pop %v1472
    %v1474 = vmul.f32 %v1440, 1.442695
    %v1475 = vpow.pop %v1474
    %v1476 = vmul.f32 %v1441, 1.442695
    %v1477 = vpow.pop %v1476
    %v1478 = vmul.f32 %v1442, 1.442695
    %v1479 = vpow.pop %v1478
    %v1480 = vmul.f32 %v1443, 1.442695
    %v1481 = vpow.pop %v1480
    %v1482 = vmul.f32 %v1444, 1.442695
    %v1483 = vpow.pop %v1482
    %v1484 = vmul.f32 %v1445, 1.442695
    %v1485 = vpow.pop %v1484
    %v1486 = vmul.f32 %v1446, 1.442695
    %v1487 = vpow.pop %v1486
    %v1488 = vmul.f32 %v1447, 1.442695
    %v1489 = vpow.pop %v1488
    %v1490 = vmul.f32 %v1448, 1.442695
    %v1491 = vpow.pop %v1490
    %v1492 = vmul.f32 %v1449, 1.442695
    %v1493 = vpow.pop %v1492
    %v1494 = vmul.f32 %v1450, 1.442695
    %v1495 = vpow.pop %v1494
    %v1496 = vmul.f32 %v1451, 1.442695
    %v1497 = vpow.pop %v1496
    %v1498 = vmul.f32 %v1452, 1.442695
    %v1499 = vpow.pop %v1498
    %v1500 = vmul.f32 %v1453, 1.442695
    %v1501 = vpow.pop %v1500
    %v1502 = vmul.f32 %v1454, 1.442695
    %v1503 = vpow.pop %v1502
    %v1504 = vmul.f32 %v1455, 1.442695
    %v1505 = vpow.pop %v1504
    %v1506 = vmul.f32 %v1456, 1.442695
    %v1507 = vpow.pop %v1506
    %v1508 = vmul.f32 %v1457, 1.442695
    %v1509 = vpow.pop %v1508
    %v1510 = vmul.f32 %v1458, 1.442695
    %v1511 = vpow.pop %v1510
    %v1512 = vmul.f32 %v1459, 1.442695
    %v1513 = vpow.pop %v1512
    %v1514 = vmul.f32 %v1460, 1.442695
    %v1515 = vpow.pop %v1514
    %v1516 = vmul.f32 %v1461, 1.442695
    %v1517 = vpow.pop %v1516
    %v1518 = vmul.f32 %v1462, 1.442695
    %v1519 = vpow.pop %v1518
    %v1520 = vmul.f32 %v1463, 1.442695
    %v1521 = vpow.pop %v1520
    %v1522 = vmul.f32 %v1464, 1.442695
    %v1523 = vpow.pop %v1522
    %v1524 = vmul.f32 %v1465, 1.442695
    %v1525 = vpow.pop %v1524
    %v1526 = vmul.f32 %v1466, 1.442695
    %v1527 = vpow.pop %v1526
    %v1528 = vmul.f32 %v1467, 1.442695
    %v1529 = vpow.pop %v1528
    %v1530 = vmul.f32 %v1468, 1.442695
    %v1531 = vpow.pop %v1530
    %v1532 = vmul.f32 %v1469, 1.442695
    %v1533 = vpow.pop %v1532
    %v1534 = vadd.f32 %v1471, 1.0
    %v1535 = vadd.f32 %v1473, 1.0
    %v1536 = vadd.f32 %v1475, 1.0
    %v1537 = vadd.f32 %v1477, 1.0
    %v1538 = vadd.f32 %v1479, 1.0
    %v1539 = vadd.f32 %v1481, 1.0
    %v1540 = vadd.f32 %v1483, 1.0
    %v1541 = vadd.f32 %v1485, 1.0
    %v1542 = vadd.f32 %v1487, 1.0
    %v1543 = vadd.f32 %v1489, 1.0
    %v1544 = vadd.f32 %v1491, 1.0
    %v1545 = vadd.f32 %v1493, 1.0
    %v1546 = vadd.f32 %v1495, 1.0
    %v1547 = vadd.f32 %v1497, 1.0
    %v1548 = vadd.f32 %v1499, 1.0
    %v1549 = vadd.f32 %v1501, 1.0
    %v1550 = vadd.f32 %v1503, 1.0
    %v1551 = vadd.f32 %v1505, 1.0
    %v1552 = vadd.f32 %v1507, 1.0
    %v1553 = vadd.f32 %v1509, 1.0
    %v1554 = vadd.f32 %v1511, 1.0
    %v1555 = vadd.f32 %v1513, 1.0
    %v1556 = vadd.f32 %v1515, 1.0
    %v1557 = vadd.f32 %v1517, 1.0
    %v1558 = vadd.f32 %v1519, 1.0
    %v1559 = vadd.f32 %v1521, 1.0
    %v1560 = vadd.f32 %v1523, 1.0
    %v1561 = vadd.f32 %v1525, 1.0
    %v1562 = vadd.f32 %v1527, 1.0
    %v1563 = vadd.f32 %v1529, 1.0
    %v1564 = vadd.f32 %v1531, 1.0
    %v1565 = vadd.f32 %v1533, 1.0
    %v1566 = vrcp.pop %v1534
    %v1567 = vmul.f32 %v1534, %v1566
    %v1568 = vsub.f32 1.0, %v1567
    %v1569 = vmul.f32 %v1566, %v1568
    %v1570 = vadd.f32 %v1566, %v1569
    %vm1571 = vweird.f32 %v1534
    %vm1572 = vweird.f32 %v1566
    %vm1573 = vmor %vm1571, %vm1572
    %v1574 = vsel %vm1573, %v1566, %v1570
    %v1575 = vand.u32 2147483647, %v1534
    %vm1576 = vcmp.eq.f32.partialorder %v1575, 8.507059e+37
    %v1577 = vand.u32 %v1534, 2147483648
    %v1578 = vor.u32 1.1754944e-38, %v1577
    %v1579 = vsel %vm1576, %v1578, %v1574
    %v1580 = vmul.f32 1.0, %v1579
    %v1581 = vrcp.pop %v1535
    %v1582 = vmul.f32 %v1535, %v1581
    %v1583 = vsub.f32 1.0, %v1582
    %v1584 = vmul.f32 %v1581, %v1583
    %v1585 = vadd.f32 %v1581, %v1584
    %vm1586 = vweird.f32 %v1535
    %vm1587 = vweird.f32 %v1581
    %vm1588 = vmor %vm1586, %vm1587
    %v1589 = vsel %vm1588, %v1581, %v1585
    %v1590 = vand.u32 2147483647, %v1535
    %vm1591 = vcmp.eq.f32.partialorder %v1590, 8.507059e+37
    %v1592 = vand.u32 %v1535, 2147483648
    %v1593 = vor.u32 1.1754944e-38, %v1592
    %v1594 = vsel %vm1591, %v1593, %v1589
    %v1595 = vmul.f32 1.0, %v1594
    %v1596 = vrcp.pop %v1536
    %v1597 = vmul.f32 %v1536, %v1596
    %v1598 = vsub.f32 1.0, %v1597
    %v1599 = vmul.f32 %v1596, %v1598
    %v1600 = vadd.f32 %v1596, %v1599
    %vm1601 = vweird.f32 %v1536
    %vm1602 = vweird.f32 %v1596
    %vm1603 = vmor %vm1601, %vm1602
    %v1604 = vsel %vm1603, %v1596, %v1600
    %v1605 = vand.u32 2147483647, %v1536
    %vm1606 = vcmp.eq.f32.partialorder %v1605, 8.507059e+37
    %v1607 = vand.u32 %v1536, 2147483648
    %v1608 = vor.u32 1.1754944e-38, %v1607
    %v1609 = vsel %vm1606, %v1608, %v1604
    %v1610 = vmul.f32 1.0, %v1609
    %v1611 = vrcp.pop %v1537
    %v1612 = vmul.f32 %v1537, %v1611
    %v1613 = vsub.f32 1.0, %v1612
    %v1614 = vmul.f32 %v1611, %v1613
    %v1615 = vadd.f32 %v1611, %v1614
    %vm1616 = vweird.f32 %v1537
    %vm1617 = vweird.f32 %v1611
    %vm1618 = vmor %vm1616, %vm1617
    %v1619 = vsel %vm1618, %v1611, %v1615
    %v1620 = vand.u32 2147483647, %v1537
    %vm1621 = vcmp.eq.f32.partialorder %v1620, 8.507059e+37
    %v1622 = vand.u32 %v1537, 2147483648
    %v1623 = vor.u32 1.1754944e-38, %v1622
    %v1624 = vsel %vm1621, %v1623, %v1619
    %v1625 = vmul.f32 1.0, %v1624
    %v1626 = vrcp.pop %v1538
    %v1627 = vmul.f32 %v1538, %v1626
    %v1628 = vsub.f32 1.0, %v1627
    %v1629 = vmul.f32 %v1626, %v1628
    %v1630 = vadd.f32 %v1626, %v1629
    %vm1631 = vweird.f32 %v1538
    %vm1632 = vweird.f32 %v1626
    %vm1633 = vmor %vm1631, %vm1632
    %v1634 = vsel %vm1633, %v1626, %v1630
    %v1635 = vand.u32 2147483647, %v1538
    %vm1636 = vcmp.eq.f32.partialorder %v1635, 8.507059e+37
    %v1637 = vand.u32 %v1538, 2147483648
    %v1638 = vor.u32 1.1754944e-38, %v1637
    %v1639 = vsel %vm1636, %v1638, %v1634
    %v1640 = vmul.f32 1.0, %v1639
    %v1641 = vrcp.pop %v1539
    %v1642 = vmul.f32 %v1539, %v1641
    %v1643 = vsub.f32 1.0, %v1642
    %v1644 = vmul.f32 %v1641, %v1643
    %v1645 = vadd.f32 %v1641, %v1644
    %vm1646 = vweird.f32 %v1539
    %vm1647 = vweird.f32 %v1641
    %vm1648 = vmor %vm1646, %vm1647
    %v1649 = vsel %vm1648, %v1641, %v1645
    %v1650 = vand.u32 2147483647, %v1539
    %vm1651 = vcmp.eq.f32.partialorder %v1650, 8.507059e+37
    %v1652 = vand.u32 %v1539, 2147483648
    %v1653 = vor.u32 1.1754944e-38, %v1652
    %v1654 = vsel %vm1651, %v1653, %v1649
    %v1655 = vmul.f32 1.0, %v1654
    %v1656 = vrcp.pop %v1540
    %v1657 = vmul.f32 %v1540, %v1656
    %v1658 = vsub.f32 1.0, %v1657
    %v1659 = vmul.f32 %v1656, %v1658
    %v1660 = vadd.f32 %v1656, %v1659
    %vm1661 = vweird.f32 %v1540
    %vm1662 = vweird.f32 %v1656
    %vm1663 = vmor %vm1661, %vm1662
    %v1664 = vsel %vm1663, %v1656, %v1660
    %v1665 = vand.u32 2147483647, %v1540
    %vm1666 = vcmp.eq.f32.partialorder %v1665, 8.507059e+37
    %v1667 = vand.u32 %v1540, 2147483648
    %v1668 = vor.u32 1.1754944e-38, %v1667
    %v1669 = vsel %vm1666, %v1668, %v1664
    %v1670 = vmul.f32 1.0, %v1669
    %v1671 = vrcp.pop %v1541
    %v1672 = vmul.f32 %v1541, %v1671
    %v1673 = vsub.f32 1.0, %v1672
    %v1674 = vmul.f32 %v1671, %v1673
    %v1675 = vadd.f32 %v1671, %v1674
    %vm1676 = vweird.f32 %v1541
    %vm1677 = vweird.f32 %v1671
    %vm1678 = vmor %vm1676, %vm1677
    %v1679 = vsel %vm1678, %v1671, %v1675
    %v1680 = vand.u32 2147483647, %v1541
    %vm1681 = vcmp.eq.f32.partialorder %v1680, 8.507059e+37
    %v1682 = vand.u32 %v1541, 2147483648
    %v1683 = vor.u32 1.1754944e-38, %v1682
    %v1684 = vsel %vm1681, %v1683, %v1679
    %v1685 = vmul.f32 1.0, %v1684
    %v1686 = vrcp.pop %v1542
    %v1687 = vmul.f32 %v1542, %v1686
    %v1688 = vsub.f32 1.0, %v1687
    %v1689 = vmul.f32 %v1686, %v1688
    %v1690 = vadd.f32 %v1686, %v1689
    %vm1691 = vweird.f32 %v1542
    %vm1692 = vweird.f32 %v1686
    %vm1693 = vmor %vm1691, %vm1692
    %v1694 = vsel %vm1693, %v1686, %v1690
    %v1695 = vand.u32 2147483647, %v1542
    %vm1696 = vcmp.eq.f32.partialorder %v1695, 8.507059e+37
    %v1697 = vand.u32 %v1542, 2147483648
    %v1698 = vor.u32 1.1754944e-38, %v1697
    %v1699 = vsel %vm1696, %v1698, %v1694
    %v1700 = vmul.f32 1.0, %v1699
    %v1701 = vrcp.pop %v1543
    %v1702 = vmul.f32 %v1543, %v1701
    %v1703 = vsub.f32 1.0, %v1702
    %v1704 = vmul.f32 %v1701, %v1703
    %v1705 = vadd.f32 %v1701, %v1704
    %vm1706 = vweird.f32 %v1543
    %vm1707 = vweird.f32 %v1701
    %vm1708 = vmor %vm1706, %vm1707
    %v1709 = vsel %vm1708, %v1701, %v1705
    %v1710 = vand.u32 2147483647, %v1543
    %vm1711 = vcmp.eq.f32.partialorder %v1710, 8.507059e+37
    %v1712 = vand.u32 %v1543, 2147483648
    %v1713 = vor.u32 1.1754944e-38, %v1712
    %v1714 = vsel %vm1711, %v1713, %v1709
    %v1715 = vmul.f32 1.0, %v1714
    %v1716 = vrcp.pop %v1544
    %v1717 = vmul.f32 %v1544, %v1716
    %v1718 = vsub.f32 1.0, %v1717
    %v1719 = vmul.f32 %v1716, %v1718
    %v1720 = vadd.f32 %v1716, %v1719
    %vm1721 = vweird.f32 %v1544
    %vm1722 = vweird.f32 %v1716
    %vm1723 = vmor %vm1721, %vm1722
    %v1724 = vsel %vm1723, %v1716, %v1720
    %v1725 = vand.u32 2147483647, %v1544
    %vm1726 = vcmp.eq.f32.partialorder %v1725, 8.507059e+37
    %v1727 = vand.u32 %v1544, 2147483648
    %v1728 = vor.u32 1.1754944e-38, %v1727
    %v1729 = vsel %vm1726, %v1728, %v1724
    %v1730 = vmul.f32 1.0, %v1729
    %v1731 = vrcp.pop %v1545
    %v1732 = vmul.f32 %v1545, %v1731
    %v1733 = vsub.f32 1.0, %v1732
    %v1734 = vmul.f32 %v1731, %v1733
    %v1735 = vadd.f32 %v1731, %v1734
    %vm1736 = vweird.f32 %v1545
    %vm1737 = vweird.f32 %v1731
    %vm1738 = vmor %vm1736, %vm1737
    %v1739 = vsel %vm1738, %v1731, %v1735
    %v1740 = vand.u32 2147483647, %v1545
    %vm1741 = vcmp.eq.f32.partialorder %v1740, 8.507059e+37
    %v1742 = vand.u32 %v1545, 2147483648
    %v1743 = vor.u32 1.1754944e-38, %v1742
    %v1744 = vsel %vm1741, %v1743, %v1739
    %v1745 = vmul.f32 1.0, %v1744
    %v1746 = vrcp.pop %v1546
    %v1747 = vmul.f32 %v1546, %v1746
    %v1748 = vsub.f32 1.0, %v1747
    %v1749 = vmul.f32 %v1746, %v1748
    %v1750 = vadd.f32 %v1746, %v1749
    %vm1751 = vweird.f32 %v1546
    %vm1752 = vweird.f32 %v1746
    %vm1753 = vmor %vm1751, %vm1752
    %v1754 = vsel %vm1753, %v1746, %v1750
    %v1755 = vand.u32 2147483647, %v1546
    %vm1756 = vcmp.eq.f32.partialorder %v1755, 8.507059e+37
    %v1757 = vand.u32 %v1546, 2147483648
    %v1758 = vor.u32 1.1754944e-38, %v1757
    %v1759 = vsel %vm1756, %v1758, %v1754
    %v1760 = vmul.f32 1.0, %v1759
    %v1761 = vrcp.pop %v1547
    %v1762 = vmul.f32 %v1547, %v1761
    %v1763 = vsub.f32 1.0, %v1762
    %v1764 = vmul.f32 %v1761, %v1763
    %v1765 = vadd.f32 %v1761, %v1764
    %vm1766 = vweird.f32 %v1547
    %vm1767 = vweird.f32 %v1761
    %vm1768 = vmor %vm1766, %vm1767
    %v1769 = vsel %vm1768, %v1761, %v1765
    %v1770 = vand.u32 2147483647, %v1547
    %vm1771 = vcmp.eq.f32.partialorder %v1770, 8.507059e+37
    %v1772 = vand.u32 %v1547, 2147483648
    %v1773 = vor.u32 1.1754944e-38, %v1772
    %v1774 = vsel %vm1771, %v1773, %v1769
    %v1775 = vmul.f32 1.0, %v1774
    %v1776 = vrcp.pop %v1548
    %v1777 = vmul.f32 %v1548, %v1776
    %v1778 = vsub.f32 1.0, %v1777
    %v1779 = vmul.f32 %v1776, %v1778
    %v1780 = vadd.f32 %v1776, %v1779
    %vm1781 = vweird.f32 %v1548
    %vm1782 = vweird.f32 %v1776
    %vm1783 = vmor %vm1781, %vm1782
    %v1784 = vsel %vm1783, %v1776, %v1780
    %v1785 = vand.u32 2147483647, %v1548
    %vm1786 = vcmp.eq.f32.partialorder %v1785, 8.507059e+37
    %v1787 = vand.u32 %v1548, 2147483648
    %v1788 = vor.u32 1.1754944e-38, %v1787
    %v1789 = vsel %vm1786, %v1788, %v1784
    %v1790 = vmul.f32 1.0, %v1789
    %v1791 = vrcp.pop %v1549
    %v1792 = vmul.f32 %v1549, %v1791
    %v1793 = vsub.f32 1.0, %v1792
    %v1794 = vmul.f32 %v1791, %v1793
    %v1795 = vadd.f32 %v1791, %v1794
    %vm1796 = vweird.f32 %v1549
    %vm1797 = vweird.f32 %v1791
    %vm1798 = vmor %vm1796, %vm1797
    %v1799 = vsel %vm1798, %v1791, %v1795
    %v1800 = vand.u32 2147483647, %v1549
    %vm1801 = vcmp.eq.f32.partialorder %v1800, 8.507059e+37
    %v1802 = vand.u32 %v1549, 2147483648
    %v1803 = vor.u32 1.1754944e-38, %v1802
    %v1804 = vsel %vm1801, %v1803, %v1799
    %v1805 = vmul.f32 1.0, %v1804
    %v1806 = vrcp.pop %v1550
    %v1807 = vmul.f32 %v1550, %v1806
    %v1808 = vsub.f32 1.0, %v1807
    %v1809 = vmul.f32 %v1806, %v1808
    %v1810 = vadd.f32 %v1806, %v1809
    %vm1811 = vweird.f32 %v1550
    %vm1812 = vweird.f32 %v1806
    %vm1813 = vmor %vm1811, %vm1812
    %v1814 = vsel %vm1813, %v1806, %v1810
    %v1815 = vand.u32 2147483647, %v1550
    %vm1816 = vcmp.eq.f32.partialorder %v1815, 8.507059e+37
    %v1817 = vand.u32 %v1550, 2147483648
    %v1818 = vor.u32 1.1754944e-38, %v1817
    %v1819 = vsel %vm1816, %v1818, %v1814
    %v1820 = vmul.f32 1.0, %v1819
    %v1821 = vrcp.pop %v1551
    %v1822 = vmul.f32 %v1551, %v1821
    %v1823 = vsub.f32 1.0, %v1822
    %v1824 = vmul.f32 %v1821, %v1823
    %v1825 = vadd.f32 %v1821, %v1824
    %vm1826 = vweird.f32 %v1551
    %vm1827 = vweird.f32 %v1821
    %vm1828 = vmor %vm1826, %vm1827
    %v1829 = vsel %vm1828, %v1821, %v1825
    %v1830 = vand.u32 2147483647, %v1551
    %vm1831 = vcmp.eq.f32.partialorder %v1830, 8.507059e+37
    %v1832 = vand.u32 %v1551, 2147483648
    %v1833 = vor.u32 1.1754944e-38, %v1832
    %v1834 = vsel %vm1831, %v1833, %v1829
    %v1835 = vmul.f32 1.0, %v1834
    %v1836 = vrcp.pop %v1552
    %v1837 = vmul.f32 %v1552, %v1836
    %v1838 = vsub.f32 1.0, %v1837
    %v1839 = vmul.f32 %v1836, %v1838
    %v1840 = vadd.f32 %v1836, %v1839
    %vm1841 = vweird.f32 %v1552
    %vm1842 = vweird.f32 %v1836
    %vm1843 = vmor %vm1841, %vm1842
    %v1844 = vsel %vm1843, %v1836, %v1840
    %v1845 = vand.u32 2147483647, %v1552
    %vm1846 = vcmp.eq.f32.partialorder %v1845, 8.507059e+37
    %v1847 = vand.u32 %v1552, 2147483648
    %v1848 = vor.u32 1.1754944e-38, %v1847
    %v1849 = vsel %vm1846, %v1848, %v1844
    %v1850 = vmul.f32 1.0, %v1849
    %v1851 = vrcp.pop %v1553
    %v1852 = vmul.f32 %v1553, %v1851
    %v1853 = vsub.f32 1.0, %v1852
    %v1854 = vmul.f32 %v1851, %v1853
    %v1855 = vadd.f32 %v1851, %v1854
    %vm1856 = vweird.f32 %v1553
    %vm1857 = vweird.f32 %v1851
    %vm1858 = vmor %vm1856, %vm1857
    %v1859 = vsel %vm1858, %v1851, %v1855
    %v1860 = vand.u32 2147483647, %v1553
    %vm1861 = vcmp.eq.f32.partialorder %v1860, 8.507059e+37
    %v1862 = vand.u32 %v1553, 2147483648
    %v1863 = vor.u32 1.1754944e-38, %v1862
    %v1864 = vsel %vm1861, %v1863, %v1859
    %v1865 = vmul.f32 1.0, %v1864
    %v1866 = vrcp.pop %v1554
    %v1867 = vmul.f32 %v1554, %v1866
    %v1868 = vsub.f32 1.0, %v1867
    %v1869 = vmul.f32 %v1866, %v1868
    %v1870 = vadd.f32 %v1866, %v1869
    %vm1871 = vweird.f32 %v1554
    %vm1872 = vweird.f32 %v1866
    %vm1873 = vmor %vm1871, %vm1872
    %v1874 = vsel %vm1873, %v1866, %v1870
    %v1875 = vand.u32 2147483647, %v1554
    %vm1876 = vcmp.eq.f32.partialorder %v1875, 8.507059e+37
    %v1877 = vand.u32 %v1554, 2147483648
    %v1878 = vor.u32 1.1754944e-38, %v1877
    %v1879 = vsel %vm1876, %v1878, %v1874
    %v1880 = vmul.f32 1.0, %v1879
    %v1881 = vrcp.pop %v1555
    %v1882 = vmul.f32 %v1555, %v1881
    %v1883 = vsub.f32 1.0, %v1882
    %v1884 = vmul.f32 %v1881, %v1883
    %v1885 = vadd.f32 %v1881, %v1884
    %vm1886 = vweird.f32 %v1555
    %vm1887 = vweird.f32 %v1881
    %vm1888 = vmor %vm1886, %vm1887
    %v1889 = vsel %vm1888, %v1881, %v1885
    %v1890 = vand.u32 2147483647, %v1555
    %vm1891 = vcmp.eq.f32.partialorder %v1890, 8.507059e+37
    %v1892 = vand.u32 %v1555, 2147483648
    %v1893 = vor.u32 1.1754944e-38, %v1892
    %v1894 = vsel %vm1891, %v1893, %v1889
    %v1895 = vmul.f32 1.0, %v1894
    %v1896 = vrcp.pop %v1556
    %v1897 = vmul.f32 %v1556, %v1896
    %v1898 = vsub.f32 1.0, %v1897
    %v1899 = vmul.f32 %v1896, %v1898
    %v1900 = vadd.f32 %v1896, %v1899
    %vm1901 = vweird.f32 %v1556
    %vm1902 = vweird.f32 %v1896
    %vm1903 = vmor %vm1901, %vm1902
    %v1904 = vsel %vm1903, %v1896, %v1900
    %v1905 = vand.u32 2147483647, %v1556
    %vm1906 = vcmp.eq.f32.partialorder %v1905, 8.507059e+37
    %v1907 = vand.u32 %v1556, 2147483648
    %v1908 = vor.u32 1.1754944e-38, %v1907
    %v1909 = vsel %vm1906, %v1908, %v1904
    %v1910 = vmul.f32 1.0, %v1909
    %v1911 = vrcp.pop %v1557
    %v1912 = vmul.f32 %v1557, %v1911
    %v1913 = vsub.f32 1.0, %v1912
    %v1914 = vmul.f32 %v1911, %v1913
    %v1915 = vadd.f32 %v1911, %v1914
    %vm1916 = vweird.f32 %v1557
    %vm1917 = vweird.f32 %v1911
    %vm1918 = vmor %vm1916, %vm1917
    %v1919 = vsel %vm1918, %v1911, %v1915
    %v1920 = vand.u32 2147483647, %v1557
    %vm1921 = vcmp.eq.f32.partialorder %v1920, 8.507059e+37
    %v1922 = vand.u32 %v1557, 2147483648
    %v1923 = vor.u32 1.1754944e-38, %v1922
    %v1924 = vsel %vm1921, %v1923, %v1919
    %v1925 = vmul.f32 1.0, %v1924
    %v1926 = vrcp.pop %v1558
    %v1927 = vmul.f32 %v1558, %v1926
    %v1928 = vsub.f32 1.0, %v1927
    %v1929 = vmul.f32 %v1926, %v1928
    %v1930 = vadd.f32 %v1926, %v1929
    %vm1931 = vweird.f32 %v1558
    %vm1932 = vweird.f32 %v1926
    %vm1933 = vmor %vm1931, %vm1932
    %v1934 = vsel %vm1933, %v1926, %v1930
    %v1935 = vand.u32 2147483647, %v1558
    %vm1936 = vcmp.eq.f32.partialorder %v1935, 8.507059e+37
    %v1937 = vand.u32 %v1558, 2147483648
    %v1938 = vor.u32 1.1754944e-38, %v1937
    %v1939 = vsel %vm1936, %v1938, %v1934
    %v1940 = vmul.f32 1.0, %v1939
    %v1941 = vrcp.pop %v1559
    %v1942 = vmul.f32 %v1559, %v1941
    %v1943 = vsub.f32 1.0, %v1942
    %v1944 = vmul.f32 %v1941, %v1943
    %v1945 = vadd.f32 %v1941, %v1944
    %vm1946 = vweird.f32 %v1559
    %vm1947 = vweird.f32 %v1941
    %vm1948 = vmor %vm1946, %vm1947
    %v1949 = vsel %vm1948, %v1941, %v1945
    %v1950 = vand.u32 2147483647, %v1559
    %vm1951 = vcmp.eq.f32.partialorder %v1950, 8.507059e+37
    %v1952 = vand.u32 %v1559, 2147483648
    %v1953 = vor.u32 1.1754944e-38, %v1952
    %v1954 = vsel %vm1951, %v1953, %v1949
    %v1955 = vmul.f32 1.0, %v1954
    %v1956 = vrcp.pop %v1560
    %v1957 = vmul.f32 %v1560, %v1956
    %v1958 = vsub.f32 1.0, %v1957
    %v1959 = vmul.f32 %v1956, %v1958
    %v1960 = vadd.f32 %v1956, %v1959
    %vm1961 = vweird.f32 %v1560
    %vm1962 = vweird.f32 %v1956
    %vm1963 = vmor %vm1961, %vm1962
    %v1964 = vsel %vm1963, %v1956, %v1960
    %v1965 = vand.u32 2147483647, %v1560
    %vm1966 = vcmp.eq.f32.partialorder %v1965, 8.507059e+37
    %v1967 = vand.u32 %v1560, 2147483648
    %v1968 = vor.u32 1.1754944e-38, %v1967
    %v1969 = vsel %vm1966, %v1968, %v1964
    %v1970 = vmul.f32 1.0, %v1969
    %v1971 = vrcp.pop %v1561
    %v1972 = vmul.f32 %v1561, %v1971
    %v1973 = vsub.f32 1.0, %v1972
    %v1974 = vmul.f32 %v1971, %v1973
    %v1975 = vadd.f32 %v1971, %v1974
    %vm1976 = vweird.f32 %v1561
    %vm1977 = vweird.f32 %v1971
    %vm1978 = vmor %vm1976, %vm1977
    %v1979 = vsel %vm1978, %v1971, %v1975
    %v1980 = vand.u32 2147483647, %v1561
    %vm1981 = vcmp.eq.f32.partialorder %v1980, 8.507059e+37
    %v1982 = vand.u32 %v1561, 2147483648
    %v1983 = vor.u32 1.1754944e-38, %v1982
    %v1984 = vsel %vm1981, %v1983, %v1979
    %v1985 = vmul.f32 1.0, %v1984
    %v1986 = vrcp.pop %v1562
    %v1987 = vmul.f32 %v1562, %v1986
    %v1988 = vsub.f32 1.0, %v1987
    %v1989 = vmul.f32 %v1986, %v1988
    %v1990 = vadd.f32 %v1986, %v1989
    %vm1991 = vweird.f32 %v1562
    %vm1992 = vweird.f32 %v1986
    %vm1993 = vmor %vm1991, %vm1992
    %v1994 = vsel %vm1993, %v1986, %v1990
    %v1995 = vand.u32 2147483647, %v1562
    %vm1996 = vcmp.eq.f32.partialorder %v1995, 8.507059e+37
    %v1997 = vand.u32 %v1562, 2147483648
    %v1998 = vor.u32 1.1754944e-38, %v1997
    %v1999 = vsel %vm1996, %v1998, %v1994
    %v2000 = vmul.f32 1.0, %v1999
    %v2001 = vrcp.pop %v1563
    %v2002 = vmul.f32 %v1563, %v2001
    %v2003 = vsub.f32 1.0, %v2002
    %v2004 = vmul.f32 %v2001, %v2003
    %v2005 = vadd.f32 %v2001, %v2004
    %vm2006 = vweird.f32 %v1563
    %vm2007 = vweird.f32 %v2001
    %vm2008 = vmor %vm2006, %vm2007
    %v2009 = vsel %vm2008, %v2001, %v2005
    %v2010 = vand.u32 2147483647, %v1563
    %vm2011 = vcmp.eq.f32.partialorder %v2010, 8.507059e+37
    %v2012 = vand.u32 %v1563, 2147483648
    %v2013 = vor.u32 1.1754944e-38, %v2012
    %v2014 = vsel %vm2011, %v2013, %v2009
    %v2015 = vmul.f32 1.0, %v2014
    %v2016 = vrcp.pop %v1564
    %v2017 = vmul.f32 %v1564, %v2016
    %v2018 = vsub.f32 1.0, %v2017
    %v2019 = vmul.f32 %v2016, %v2018
    %v2020 = vadd.f32 %v2016, %v2019
    %vm2021 = vweird.f32 %v1564
    %vm2022 = vweird.f32 %v2016
    %vm2023 = vmor %vm2021, %vm2022
    %v2024 = vsel %vm2023, %v2016, %v2020
    %v2025 = vand.u32 2147483647, %v1564
    %vm2026 = vcmp.eq.f32.partialorder %v2025, 8.507059e+37
    %v2027 = vand.u32 %v1564, 2147483648
    %v2028 = vor.u32 1.1754944e-38, %v2027
    %v2029 = vsel %vm2026, %v2028, %v2024
    %v2030 = vmul.f32 1.0, %v2029
    %v2031 = vrcp.pop %v1565
    %v2032 = vmul.f32 %v1565, %v2031
    %v2033 = vsub.f32 1.0, %v2032
    %v2034 = vmul.f32 %v2031, %v2033
    %v2035 = vadd.f32 %v2031, %v2034
    %vm2036 = vweird.f32 %v1565
    %vm2037 = vweird.f32 %v2031
    %vm2038 = vmor %vm2036, %vm2037
    %v2039 = vsel %vm2038, %v2031, %v2035
    %v2040 = vand.u32 2147483647, %v1565
    %vm2041 = vcmp.eq.f32.partialorder %v2040, 8.507059e+37
    %v2042 = vand.u32 %v1565, 2147483648
    %v2043 = vor.u32 1.1754944e-38, %v2042
    %v2044 = vsel %vm2041, %v2043, %v2039
    %v2045 = vmul.f32 1.0, %v2044
    %v2078 = vperm.slane %v1580, 0
    %v2079 = vperm.slane %v1580, 1
    %v2080 = vperm.slane %v1580, 2
    %v2081 = vperm.slane %v1580, 3
    %v2082 = vperm.slane %v1580, 4
    %v2083 = vperm.slane %v1580, 5
    %v2084 = vperm.slane %v1580, 6
    %v2085 = vperm.slane %v1580, 7
    %v2086 = vperm.slane %v1595, 0
    %v2087 = vperm.slane %v1595, 1
    %v2088 = vperm.slane %v1595, 2
    %v2089 = vperm.slane %v1595, 3
    %v2090 = vperm.slane %v1595, 4
    %v2091 = vperm.slane %v1595, 5
    %v2092 = vperm.slane %v1595, 6
    %v2093 = vperm.slane %v1595, 7
    %v2094 = vperm.slane %v1610, 0
    %v2095 = vperm.slane %v1610, 1
    %v2096 = vperm.slane %v1610, 2
    %v2097 = vperm.slane %v1610, 3
    %v2098 = vperm.slane %v1610, 4
    %v2099 = vperm.slane %v1610, 5
    %v2100 = vperm.slane %v1610, 6
    %v2101 = vperm.slane %v1610, 7
    %v2102 = vperm.slane %v1625, 0
    %v2103 = vperm.slane %v1625, 1
    %v2104 = vperm.slane %v1625, 2
    %v2105 = vperm.slane %v1625, 3
    %v2106 = vperm.slane %v1625, 4
    %v2107 = vperm.slane %v1625, 5
    %v2108 = vperm.slane %v1625, 6
    %v2109 = vperm.slane %v1625, 7
    %v2110 = vperm.slane %v1640, 0
    %v2111 = vperm.slane %v1640, 1
    %v2112 = vperm.slane %v1640, 2
    %v2113 = vperm.slane %v1640, 3
    %v2114 = vperm.slane %v1640, 4
    %v2115 = vperm.slane %v1640, 5
    %v2116 = vperm.slane %v1640, 6
    %v2117 = vperm.slane %v1640, 7
    %v2118 = vperm.slane %v1655, 0
    %v2119 = vperm.slane %v1655, 1
    %v2120 = vperm.slane %v1655, 2
    %v2121 = vperm.slane %v1655, 3
    %v2122 = vperm.slane %v1655, 4
    %v2123 = vperm.slane %v1655, 5
    %v2124 = vperm.slane %v1655, 6
    %v2125 = vperm.slane %v1655, 7
    %v2126 = vperm.slane %v1670, 0
    %v2127 = vperm.slane %v1670, 1
    %v2128 = vperm.slane %v1670, 2
    %v2129 = vperm.slane %v1670, 3
    %v2130 = vperm.slane %v1670, 4
    %v2131 = vperm.slane %v1670, 5
    %v2132 = vperm.slane %v1670, 6
    %v2133 = vperm.slane %v1670, 7
    %v2134 = vperm.slane %v1685, 0
    %v2135 = vperm.slane %v1685, 1
    %v2136 = vperm.slane %v1685, 2
    %v2137 = vperm.slane %v1685, 3
    %v2138 = vperm.slane %v1685, 4
    %v2139 = vperm.slane %v1685, 5
    %v2140 = vperm.slane %v1685, 6
    %v2141 = vperm.slane %v1685, 7
    %v2142 = vperm.slane %v1700, 0
    %v2143 = vperm.slane %v1700, 1
    %v2144 = vperm.slane %v1700, 2
    %v2145 = vperm.slane %v1700, 3
    %v2146 = vperm.slane %v1700, 4
    %v2147 = vperm.slane %v1700, 5
    %v2148 = vperm.slane %v1700, 6
    %v2149 = vperm.slane %v1700, 7
    %v2150 = vperm.slane %v1715, 0
    %v2151 = vperm.slane %v1715, 1
    %v2152 = vperm.slane %v1715, 2
    %v2153 = vperm.slane %v1715, 3
    %v2154 = vperm.slane %v1715, 4
    %v2155 = vperm.slane %v1715, 5
    %v2156 = vperm.slane %v1715, 6
    %v2157 = vperm.slane %v1715, 7
    %v2158 = vperm.slane %v1730, 0
    %v2159 = vperm.slane %v1730, 1
    %v2160 = vperm.slane %v1730, 2
    %v2161 = vperm.slane %v1730, 3
    %v2162 = vperm.slane %v1730, 4
    %v2163 = vperm.slane %v1730, 5
    %v2164 = vperm.slane %v1730, 6
    %v2165 = vperm.slane %v1730, 7
    %v2166 = vperm.slane %v1745, 0
    %v2167 = vperm.slane %v1745, 1
    %v2168 = vperm.slane %v1745, 2
    %v2169 = vperm.slane %v1745, 3
    %v2170 = vperm.slane %v1745, 4
    %v2171 = vperm.slane %v1745, 5
    %v2172 = vperm.slane %v1745, 6
    %v2173 = vperm.slane %v1745, 7
    %v2174 = vperm.slane %v1760, 0
    %v2175 = vperm.slane %v1760, 1
    %v2176 = vperm.slane %v1760, 2
    %v2177 = vperm.slane %v1760, 3
    %v2178 = vperm.slane %v1760, 4
    %v2179 = vperm.slane %v1760, 5
    %v2180 = vperm.slane %v1760, 6
    %v2181 = vperm.slane %v1760, 7
    %v2182 = vperm.slane %v1775, 0
    %v2183 = vperm.slane %v1775, 1
    %v2184 = vperm.slane %v1775, 2
    %v2185 = vperm.slane %v1775, 3
    %v2186 = vperm.slane %v1775, 4
    %v2187 = vperm.slane %v1775, 5
    %v2188 = vperm.slane %v1775, 6
    %v2189 = vperm.slane %v1775, 7
    %v2190 = vperm.slane %v1790, 0
    %v2191 = vperm.slane %v1790, 1
    %v2192 = vperm.slane %v1790, 2
    %v2193 = vperm.slane %v1790, 3
    %v2194 = vperm.slane %v1790, 4
    %v2195 = vperm.slane %v1790, 5
    %v2196 = vperm.slane %v1790, 6
    %v2197 = vperm.slane %v1790, 7
    %v2198 = vperm.slane %v1805, 0
    %v2199 = vperm.slane %v1805, 1
    %v2200 = vperm.slane %v1805, 2
    %v2201 = vperm.slane %v1805, 3
    %v2202 = vperm.slane %v1805, 4
    %v2203 = vperm.slane %v1805, 5
    %v2204 = vperm.slane %v1805, 6
    %v2205 = vperm.slane %v1805, 7
    %v2206 = vperm.slane %v1820, 0
    %v2207 = vperm.slane %v1820, 1
    %v2208 = vperm.slane %v1820, 2
    %v2209 = vperm.slane %v1820, 3
    %v2210 = vperm.slane %v1820, 4
    %v2211 = vperm.slane %v1820, 5
    %v2212 = vperm.slane %v1820, 6
    %v2213 = vperm.slane %v1820, 7
    %v2214 = vperm.slane %v1835, 0
    %v2215 = vperm.slane %v1835, 1
    %v2216 = vperm.slane %v1835, 2
    %v2217 = vperm.slane %v1835, 3
    %v2218 = vperm.slane %v1835, 4
    %v2219 = vperm.slane %v1835, 5
    %v2220 = vperm.slane %v1835, 6
    %v2221 = vperm.slane %v1835, 7
    %v2222 = vperm.slane %v1850, 0
    %v2223 = vperm.slane %v1850, 1
    %v2224 = vperm.slane %v1850, 2
    %v2225 = vperm.slane %v1850, 3
    %v2226 = vperm.slane %v1850, 4
    %v2227 = vperm.slane %v1850, 5
    %v2228 = vperm.slane %v1850, 6
    %v2229 = vperm.slane %v1850, 7
    %v2230 = vperm.slane %v1865, 0
    %v2231 = vperm.slane %v1865, 1
    %v2232 = vperm.slane %v1865, 2
    %v2233 = vperm.slane %v1865, 3
    %v2234 = vperm.slane %v1865, 4
    %v2235 = vperm.slane %v1865, 5
    %v2236 = vperm.slane %v1865, 6
    %v2237 = vperm.slane %v1865, 7
    %v2238 = vperm.slane %v1880, 0
    %v2239 = vperm.slane %v1880, 1
    %v2240 = vperm.slane %v1880, 2
    %v2241 = vperm.slane %v1880, 3
    %v2242 = vperm.slane %v1880, 4
    %v2243 = vperm.slane %v1880, 5
    %v2244 = vperm.slane %v1880, 6
    %v2245 = vperm.slane %v1880, 7
    %v2246 = vperm.slane %v1895, 0
    %v2247 = vperm.slane %v1895, 1
    %v2248 = vperm.slane %v1895, 2
    %v2249 = vperm.slane %v1895, 3
    %v2250 = vperm.slane %v1895, 4
    %v2251 = vperm.slane %v1895, 5
    %v2252 = vperm.slane %v1895, 6
    %v2253 = vperm.slane %v1895, 7
    %v2254 = vperm.slane %v1910, 0
    %v2255 = vperm.slane %v1910, 1
    %v2256 = vperm.slane %v1910, 2
    %v2257 = vperm.slane %v1910, 3
    %v2258 = vperm.slane %v1910, 4
    %v2259 = vperm.slane %v1910, 5
    %v2260 = vperm.slane %v1910, 6
    %v2261 = vperm.slane %v1910, 7
    %v2262 = vperm.slane %v1925, 0
    %v2263 = vperm.slane %v1925, 1
    %v2264 = vperm.slane %v1925, 2
    %v2265 = vperm.slane %v1925, 3
    %v2266 = vperm.slane %v1925, 4
    %v2267 = vperm.slane %v1925, 5
    %v2268 = vperm.slane %v1925, 6
    %v2269 = vperm.slane %v1925, 7
    %v2270 = vperm.slane %v1940, 0
    %v2271 = vperm.slane %v1940, 1
    %v2272 = vperm.slane %v1940, 2
    %v2273 = vperm.slane %v1940, 3
    %v2274 = vperm.slane %v1940, 4
    %v2275 = vperm.slane %v1940, 5
    %v2276 = vperm.slane %v1940, 6
    %v2277 = vperm.slane %v1940, 7
    %v2278 = vperm.slane %v1955, 0
    %v2279 = vperm.slane %v1955, 1
    %v2280 = vperm.slane %v1955, 2
    %v2281 = vperm.slane %v1955, 3
    %v2282 = vperm.slane %v1955, 4
    %v2283 = vperm.slane %v1955, 5
    %v2284 = vperm.slane %v1955, 6
    %v2285 = vperm.slane %v1955, 7
    %v2286 = vperm.slane %v1970, 0
    %v2287 = vperm.slane %v1970, 1
    %v2288 = vperm.slane %v1970, 2
    %v2289 = vperm.slane %v1970, 3
    %v2290 = vperm.slane %v1970, 4
    %v2291 = vperm.slane %v1970, 5
    %v2292 = vperm.slane %v1970, 6
    %v2293 = vperm.slane %v1970, 7
    %v2294 = vperm.slane %v1985, 0
    %v2295 = vperm.slane %v1985, 1
    %v2296 = vperm.slane %v1985, 2
    %v2297 = vperm.slane %v1985, 3
    %v2298 = vperm.slane %v1985, 4
    %v2299 = vperm.slane %v1985, 5
    %v2300 = vperm.slane %v1985, 6
    %v2301 = vperm.slane %v1985, 7
    %v2302 = vperm.slane %v2000, 0
    %v2303 = vperm.slane %v2000, 1
    %v2304 = vperm.slane %v2000, 2
    %v2305 = vperm.slane %v2000, 3
    %v2306 = vperm.slane %v2000, 4
    %v2307 = vperm.slane %v2000, 5
    %v2308 = vperm.slane %v2000, 6
    %v2309 = vperm.slane %v2000, 7
    %v2310 = vperm.slane %v2015, 0
    %v2311 = vperm.slane %v2015, 1
    %v2312 = vperm.slane %v2015, 2
    %v2313 = vperm.slane %v2015, 3
    %v2314 = vperm.slane %v2015, 4
    %v2315 = vperm.slane %v2015, 5
    %v2316 = vperm.slane %v2015, 6
    %v2317 = vperm.slane %v2015, 7
    %v2318 = vperm.slane %v2030, 0
    %v2319 = vperm.slane %v2030, 1
    %v2320 = vperm.slane %v2030, 2
    %v2321 = vperm.slane %v2030, 3
    %v2322 = vperm.slane %v2030, 4
    %v2323 = vperm.slane %v2030, 5
    %v2324 = vperm.slane %v2030, 6
    %v2325 = vperm.slane %v2030, 7
    %v2326 = vperm.slane %v2045, 0
    %v2327 = vperm.slane %v2045, 1
    %v2328 = vperm.slane %v2045, 2
    %v2329 = vperm.slane %v2045, 3
    %v2330 = vperm.slane %v2045, 4
    %v2331 = vperm.slane %v2045, 5
    %v2332 = vperm.slane %v2045, 6
    %v2333 = vperm.slane %v2045, 7
    %2334 = vst [vmem:[#allocation1] ss:$9 sm:$0xff] %v2078
    %s2335 = scalar_lea.vmem [#allocation1], 1
    %2336 = vst [vmem:[%s2335] ss:$9 sm:$0xff] %v2079
    %s2337 = scalar_lea.vmem [#allocation1], 2
    %2338 = vst [vmem:[%s2337] ss:$9 sm:$0xff] %v2080
    %s2339 = scalar_lea.vmem [#allocation1], 3
    %2340 = vst [vmem:[%s2339] ss:$9 sm:$0xff] %v2081
    %s2341 = scalar_lea.vmem [#allocation1], 4
    %2342 = vst [vmem:[%s2341] ss:$9 sm:$0xff] %v2082
    %s2343 = scalar_lea.vmem [#allocation1], 5
    %2344 = vst [vmem:[%s2343] ss:$9 sm:$0xff] %v2083
    %s2345 = scalar_lea.vmem [#allocation1], 6
    %2346 = vst [vmem:[%s2345] ss:$9 sm:$0xff] %v2084
    %s2347 = scalar_lea.vmem [#allocation1], 7
    %2348 = vst [vmem:[%s2347] ss:$9 sm:$0xff] %v2085
    %v2349 = vld [vmem:[#allocation1] sm:$0xff]
    %2350 = vst [vmem:[#allocation1] ss:$9 sm:$0xff] %v2086
    %2351 = vst [vmem:[%s2335] ss:$9 sm:$0xff] %v2087
    %2352 = vst [vmem:[%s2337] ss:$9 sm:$0xff] %v2088
    %2353 = vst [vmem:[%s2339] ss:$9 sm:$0xff] %v2089
    %2354 = vst [vmem:[%s2341] ss:$9 sm:$0xff] %v2090
    %2355 = vst [vmem:[%s2343] ss:$9 sm:$0xff] %v2091
    %2356 = vst [vmem:[%s2345] ss:$9 sm:$0xff] %v2092
    %2357 = vst [vmem:[%s2347] ss:$9 sm:$0xff] %v2093
    %v2358 = vld [vmem:[#allocation1] sm:$0xff]
    %2359 = vst [vmem:[#allocation1] ss:$9 sm:$0xff] %v2094
    %2360 = vst [vmem:[%s2335] ss:$9 sm:$0xff] %v2095
    %2361 = vst [vmem:[%s2337] ss:$9 sm:$0xff] %v2096
    %2362 = vst [vmem:[%s2339] ss:$9 sm:$0xff] %v2097
    %2363 = vst [vmem:[%s2341] ss:$9 sm:$0xff] %v2098
    %2364 = vst [vmem:[%s2343] ss:$9 sm:$0xff] %v2099
    %2365 = vst [vmem:[%s2345] ss:$9 sm:$0xff] %v2100
    %2366 = vst [vmem:[%s2347] ss:$9 sm:$0xff] %v2101
    %v2367 = vld [vmem:[#allocation1] sm:$0xff]
    %2368 = vst [vmem:[#allocation1] ss:$9 sm:$0xff] %v2102
    %2369 = vst [vmem:[%s2335] ss:$9 sm:$0xff] %v2103
    %2370 = vst [vmem:[%s2337] ss:$9 sm:$0xff] %v2104
    %2371 = vst [vmem:[%s2339] ss:$9 sm:$0xff] %v2105
    %2372 = vst [vmem:[%s2341] ss:$9 sm:$0xff] %v2106
    %2373 = vst [vmem:[%s2343] ss:$9 sm:$0xff] %v2107
    %2374 = vst [vmem:[%s2345] ss:$9 sm:$0xff] %v2108
    %2375 = vst [vmem:[%s2347] ss:$9 sm:$0xff] %v2109
    %v2376 = vld [vmem:[#allocation1] sm:$0xff]
    %2377 = vst [vmem:[#allocation1] ss:$9 sm:$0xff] %v2110
    %2378 = vst [vmem:[%s2335] ss:$9 sm:$0xff] %v2111
    %2379 = vst [vmem:[%s2337] ss:$9 sm:$0xff] %v2112
    %2380 = vst [vmem:[%s2339] ss:$9 sm:$0xff] %v2113
    %2381 = vst [vmem:[%s2341] ss:$9 sm:$0xff] %v2114
    %2382 = vst [vmem:[%s2343] ss:$9 sm:$0xff] %v2115
    %2383 = vst [vmem:[%s2345] ss:$9 sm:$0xff] %v2116
    %2384 = vst [vmem:[%s2347] ss:$9 sm:$0xff] %v2117
    %v2385 = vld [vmem:[#allocation1] sm:$0xff]
    %2386 = vst [vmem:[#allocation1] ss:$9 sm:$0xff] %v2118
    %2387 = vst [vmem:[%s2335] ss:$9 sm:$0xff] %v2119
    %2388 = vst [vmem:[%s2337] ss:$9 sm:$0xff] %v2120
    %2389 = vst [vmem:[%s2339] ss:$9 sm:$0xff] %v2121
    %2390 = vst [vmem:[%s2341] ss:$9 sm:$0xff] %v2122
    %2391 = vst [vmem:[%s2343] ss:$9 sm:$0xff] %v2123
    %2392 = vst [vmem:[%s2345] ss:$9 sm:$0xff] %v2124
    %2393 = vst [vmem:[%s2347] ss:$9 sm:$0xff] %v2125
    %v2394 = vld [vmem:[#allocation1] sm:$0xff]
    %2395 = vst [vmem:[#allocation1] ss:$9 sm:$0xff] %v2126
    %2396 = vst [vmem:[%s2335] ss:$9 sm:$0xff] %v2127
    %2397 = vst [vmem:[%s2337] ss:$9 sm:$0xff] %v2128
    %2398 = vst [vmem:[%s2339] ss:$9 sm:$0xff] %v2129
    %2399 = vst [vmem:[%s2341] ss:$9 sm:$0xff] %v2130
    %2400 = vst [vmem:[%s2343] ss:$9 sm:$0xff] %v2131
    %2401 = vst [vmem:[%s2345] ss:$9 sm:$0xff] %v2132
    %2402 = vst [vmem:[%s2347] ss:$9 sm:$0xff] %v2133
    %v2403 = vld [vmem:[#allocation1] sm:$0xff]
    %2404 = vst [vmem:[#allocation1] ss:$9 sm:$0xff] %v2134
    %2405 = vst [vmem:[%s2335] ss:$9 sm:$0xff] %v2135
    %2406 = vst [vmem:[%s2337] ss:$9 sm:$0xff] %v2136
    %2407 = vst [vmem:[%s2339] ss:$9 sm:$0xff] %v2137
    %2408 = vst [vmem:[%s2341] ss:$9 sm:$0xff] %v2138
    %2409 = vst [vmem:[%s2343] ss:$9 sm:$0xff] %v2139
    %2410 = vst [vmem:[%s2345] ss:$9 sm:$0xff] %v2140
    %2411 = vst [vmem:[%s2347] ss:$9 sm:$0xff] %v2141
    %v2412 = vld [vmem:[#allocation1] sm:$0xff]
    %2413 = vst [vmem:[#allocation1] ss:$9 sm:$0xff] %v2142
    %2414 = vst [vmem:[%s2335] ss:$9 sm:$0xff] %v2143
    %2415 = vst [vmem:[%s2337] ss:$9 sm:$0xff] %v2144
    %2416 = vst [vmem:[%s2339] ss:$9 sm:$0xff] %v2145
    %2417 = vst [vmem:[%s2341] ss:$9 sm:$0xff] %v2146
    %2418 = vst [vmem:[%s2343] ss:$9 sm:$0xff] %v2147
    %2419 = vst [vmem:[%s2345] ss:$9 sm:$0xff] %v2148
    %2420 = vst [vmem:[%s2347] ss:$9 sm:$0xff] %v2149
    %v2421 = vld [vmem:[#allocation1] sm:$0xff]
    %2422 = vst [vmem:[#allocation1] ss:$9 sm:$0xff] %v2150
    %2423 = vst [vmem:[%s2335] ss:$9 sm:$0xff] %v2151
    %2424 = vst [vmem:[%s2337] ss:$9 sm:$0xff] %v2152
    %2425 = vst [vmem:[%s2339] ss:$9 sm:$0xff] %v2153
    %2426 = vst [vmem:[%s2341] ss:$9 sm:$0xff] %v2154
    %2427 = vst [vmem:[%s2343] ss:$9 sm:$0xff] %v2155
    %2428 = vst [vmem:[%s2345] ss:$9 sm:$0xff] %v2156
    %2429 = vst [vmem:[%s2347] ss:$9 sm:$0xff] %v2157
    %v2430 = vld [vmem:[#allocation1] sm:$0xff]
    %2431 = vst [vmem:[#allocation1] ss:$9 sm:$0xff] %v2158
    %2432 = vst [vmem:[%s2335] ss:$9 sm:$0xff] %v2159
    %2433 = vst [vmem:[%s2337] ss:$9 sm:$0xff] %v2160
    %2434 = vst [vmem:[%s2339] ss:$9 sm:$0xff] %v2161
    %2435 = vst [vmem:[%s2341] ss:$9 sm:$0xff] %v2162
    %2436 = vst [vmem:[%s2343] ss:$9 sm:$0xff] %v2163
    %2437 = vst [vmem:[%s2345] ss:$9 sm:$0xff] %v2164
    %2438 = vst [vmem:[%s2347] ss:$9 sm:$0xff] %v2165
    %v2439 = vld [vmem:[#allocation1] sm:$0xff]
    %2440 = vst [vmem:[#allocation1] ss:$9 sm:$0xff] %v2166
    %2441 = vst [vmem:[%s2335] ss:$9 sm:$0xff] %v2167
    %2442 = vst [vmem:[%s2337] ss:$9 sm:$0xff] %v2168
    %2443 = vst [vmem:[%s2339] ss:$9 sm:$0xff] %v2169
    %2444 = vst [vmem:[%s2341] ss:$9 sm:$0xff] %v2170
    %2445 = vst [vmem:[%s2343] ss:$9 sm:$0xff] %v2171
    %2446 = vst [vmem:[%s2345] ss:$9 sm:$0xff] %v2172
    %2447 = vst [vmem:[%s2347] ss:$9 sm:$0xff] %v2173
    %v2448 = vld [vmem:[#allocation1] sm:$0xff]
    %2449 = vst [vmem:[#allocation1] ss:$9 sm:$0xff] %v2174
    %2450 = vst [vmem:[%s2335] ss:$9 sm:$0xff] %v2175
    %2451 = vst [vmem:[%s2337] ss:$9 sm:$0xff] %v2176
    %2452 = vst [vmem:[%s2339] ss:$9 sm:$0xff] %v2177
    %2453 = vst [vmem:[%s2341] ss:$9 sm:$0xff] %v2178
    %2454 = vst [vmem:[%s2343] ss:$9 sm:$0xff] %v2179
    %2455 = vst [vmem:[%s2345] ss:$9 sm:$0xff] %v2180
    %2456 = vst [vmem:[%s2347] ss:$9 sm:$0xff] %v2181
    %v2457 = vld [vmem:[#allocation1] sm:$0xff]
    %2458 = vst [vmem:[#allocation1] ss:$9 sm:$0xff] %v2182
    %2459 = vst [vmem:[%s2335] ss:$9 sm:$0xff] %v2183
    %2460 = vst [vmem:[%s2337] ss:$9 sm:$0xff] %v2184
    %2461 = vst [vmem:[%s2339] ss:$9 sm:$0xff] %v2185
    %2462 = vst [vmem:[%s2341] ss:$9 sm:$0xff] %v2186
    %2463 = vst [vmem:[%s2343] ss:$9 sm:$0xff] %v2187
    %2464 = vst [vmem:[%s2345] ss:$9 sm:$0xff] %v2188
    %2465 = vst [vmem:[%s2347] ss:$9 sm:$0xff] %v2189
    %v2466 = vld [vmem:[#allocation1] sm:$0xff]
    %2467 = vst [vmem:[#allocation1] ss:$9 sm:$0xff] %v2190
    %2468 = vst [vmem:[%s2335] ss:$9 sm:$0xff] %v2191
    %2469 = vst [vmem:[%s2337] ss:$9 sm:$0xff] %v2192
    %2470 = vst [vmem:[%s2339] ss:$9 sm:$0xff] %v2193
    %2471 = vst [vmem:[%s2341] ss:$9 sm:$0xff] %v2194
    %2472 = vst [vmem:[%s2343] ss:$9 sm:$0xff] %v2195
    %2473 = vst [vmem:[%s2345] ss:$9 sm:$0xff] %v2196
    %2474 = vst [vmem:[%s2347] ss:$9 sm:$0xff] %v2197
    %v2475 = vld [vmem:[#allocation1] sm:$0xff]
    %2476 = vst [vmem:[#allocation1] ss:$9 sm:$0xff] %v2198
    %2477 = vst [vmem:[%s2335] ss:$9 sm:$0xff] %v2199
    %2478 = vst [vmem:[%s2337] ss:$9 sm:$0xff] %v2200
    %2479 = vst [vmem:[%s2339] ss:$9 sm:$0xff] %v2201
    %2480 = vst [vmem:[%s2341] ss:$9 sm:$0xff] %v2202
    %2481 = vst [vmem:[%s2343] ss:$9 sm:$0xff] %v2203
    %2482 = vst [vmem:[%s2345] ss:$9 sm:$0xff] %v2204
    %2483 = vst [vmem:[%s2347] ss:$9 sm:$0xff] %v2205
    %v2484 = vld [vmem:[#allocation1] sm:$0xff]
    %2485 = vst [vmem:[#allocation1] ss:$9 sm:$0xff] %v2206
    %2486 = vst [vmem:[%s2335] ss:$9 sm:$0xff] %v2207
    %2487 = vst [vmem:[%s2337] ss:$9 sm:$0xff] %v2208
    %2488 = vst [vmem:[%s2339] ss:$9 sm:$0xff] %v2209
    %2489 = vst [vmem:[%s2341] ss:$9 sm:$0xff] %v2210
    %2490 = vst [vmem:[%s2343] ss:$9 sm:$0xff] %v2211
    %2491 = vst [vmem:[%s2345] ss:$9 sm:$0xff] %v2212
    %2492 = vst [vmem:[%s2347] ss:$9 sm:$0xff] %v2213
    %v2493 = vld [vmem:[#allocation1] sm:$0xff]
    %2494 = vst [vmem:[#allocation1] ss:$9 sm:$0xff] %v2214
    %2495 = vst [vmem:[%s2335] ss:$9 sm:$0xff] %v2215
    %2496 = vst [vmem:[%s2337] ss:$9 sm:$0xff] %v2216
    %2497 = vst [vmem:[%s2339] ss:$9 sm:$0xff] %v2217
    %2498 = vst [vmem:[%s2341] ss:$9 sm:$0xff] %v2218
    %2499 = vst [vmem:[%s2343] ss:$9 sm:$0xff] %v2219
    %2500 = vst [vmem:[%s2345] ss:$9 sm:$0xff] %v2220
    %2501 = vst [vmem:[%s2347] ss:$9 sm:$0xff] %v2221
    %v2502 = vld [vmem:[#allocation1] sm:$0xff]
    %2503 = vst [vmem:[#allocation1] ss:$9 sm:$0xff] %v2222
    %2504 = vst [vmem:[%s2335] ss:$9 sm:$0xff] %v2223
    %2505 = vst [vmem:[%s2337] ss:$9 sm:$0xff] %v2224
    %2506 = vst [vmem:[%s2339] ss:$9 sm:$0xff] %v2225
    %2507 = vst [vmem:[%s2341] ss:$9 sm:$0xff] %v2226
    %2508 = vst [vmem:[%s2343] ss:$9 sm:$0xff] %v2227
    %2509 = vst [vmem:[%s2345] ss:$9 sm:$0xff] %v2228
    %2510 = vst [vmem:[%s2347] ss:$9 sm:$0xff] %v2229
    %v2511 = vld [vmem:[#allocation1] sm:$0xff]
    %2512 = vst [vmem:[#allocation1] ss:$9 sm:$0xff] %v2230
    %2513 = vst [vmem:[%s2335] ss:$9 sm:$0xff] %v2231
    %2514 = vst [vmem:[%s2337] ss:$9 sm:$0xff] %v2232
    %2515 = vst [vmem:[%s2339] ss:$9 sm:$0xff] %v2233
    %2516 = vst [vmem:[%s2341] ss:$9 sm:$0xff] %v2234
    %2517 = vst [vmem:[%s2343] ss:$9 sm:$0xff] %v2235
    %2518 = vst [vmem:[%s2345] ss:$9 sm:$0xff] %v2236
    %2519 = vst [vmem:[%s2347] ss:$9 sm:$0xff] %v2237
    %v2520 = vld [vmem:[#allocation1] sm:$0xff]
    %2521 = vst [vmem:[#allocation1] ss:$9 sm:$0xff] %v2238
    %2522 = vst [vmem:[%s2335] ss:$9 sm:$0xff] %v2239
    %2523 = vst [vmem:[%s2337] ss:$9 sm:$0xff] %v2240
    %2524 = vst [vmem:[%s2339] ss:$9 sm:$0xff] %v2241
    %2525 = vst [vmem:[%s2341] ss:$9 sm:$0xff] %v2242
    %2526 = vst [vmem:[%s2343] ss:$9 sm:$0xff] %v2243
    %2527 = vst [vmem:[%s2345] ss:$9 sm:$0xff] %v2244
    %2528 = vst [vmem:[%s2347] ss:$9 sm:$0xff] %v2245
    %v2529 = vld [vmem:[#allocation1] sm:$0xff]
    %2530 = vst [vmem:[#allocation1] ss:$9 sm:$0xff] %v2246
    %2531 = vst [vmem:[%s2335] ss:$9 sm:$0xff] %v2247
    %2532 = vst [vmem:[%s2337] ss:$9 sm:$0xff] %v2248
    %2533 = vst [vmem:[%s2339] ss:$9 sm:$0xff] %v2249
    %2534 = vst [vmem:[%s2341] ss:$9 sm:$0xff] %v2250
    %2535 = vst [vmem:[%s2343] ss:$9 sm:$0xff] %v2251
    %2536 = vst [vmem:[%s2345] ss:$9 sm:$0xff] %v2252
    %2537 = vst [vmem:[%s2347] ss:$9 sm:$0xff] %v2253
    %v2538 = vld [vmem:[#allocation1] sm:$0xff]
    %2539 = vst [vmem:[#allocation1] ss:$9 sm:$0xff] %v2254
    %2540 = vst [vmem:[%s2335] ss:$9 sm:$0xff] %v2255
    %2541 = vst [vmem:[%s2337] ss:$9 sm:$0xff] %v2256
    %2542 = vst [vmem:[%s2339] ss:$9 sm:$0xff] %v2257
    %2543 = vst [vmem:[%s2341] ss:$9 sm:$0xff] %v2258
    %2544 = vst [vmem:[%s2343] ss:$9 sm:$0xff] %v2259
    %2545 = vst [vmem:[%s2345] ss:$9 sm:$0xff] %v2260
    %2546 = vst [vmem:[%s2347] ss:$9 sm:$0xff] %v2261
    %v2547 = vld [vmem:[#allocation1] sm:$0xff]
    %2548 = vst [vmem:[#allocation1] ss:$9 sm:$0xff] %v2262
    %2549 = vst [vmem:[%s2335] ss:$9 sm:$0xff] %v2263
    %2550 = vst [vmem:[%s2337] ss:$9 sm:$0xff] %v2264
    %2551 = vst [vmem:[%s2339] ss:$9 sm:$0xff] %v2265
    %2552 = vst [vmem:[%s2341] ss:$9 sm:$0xff] %v2266
    %2553 = vst [vmem:[%s2343] ss:$9 sm:$0xff] %v2267
    %2554 = vst [vmem:[%s2345] ss:$9 sm:$0xff] %v2268
    %2555 = vst [vmem:[%s2347] ss:$9 sm:$0xff] %v2269
    %v2556 = vld [vmem:[#allocation1] sm:$0xff]
    %2557 = vst [vmem:[#allocation1] ss:$9 sm:$0xff] %v2270
    %2558 = vst [vmem:[%s2335] ss:$9 sm:$0xff] %v2271
    %2559 = vst [vmem:[%s2337] ss:$9 sm:$0xff] %v2272
    %2560 = vst [vmem:[%s2339] ss:$9 sm:$0xff] %v2273
    %2561 = vst [vmem:[%s2341] ss:$9 sm:$0xff] %v2274
    %2562 = vst [vmem:[%s2343] ss:$9 sm:$0xff] %v2275
    %2563 = vst [vmem:[%s2345] ss:$9 sm:$0xff] %v2276
    %2564 = vst [vmem:[%s2347] ss:$9 sm:$0xff] %v2277
    %v2565 = vld [vmem:[#allocation1] sm:$0xff]
    %2566 = vst [vmem:[#allocation1] ss:$9 sm:$0xff] %v2278
    %2567 = vst [vmem:[%s2335] ss:$9 sm:$0xff] %v2279
    %2568 = vst [vmem:[%s2337] ss:$9 sm:$0xff] %v2280
    %2569 = vst [vmem:[%s2339] ss:$9 sm:$0xff] %v2281
    %2570 = vst [vmem:[%s2341] ss:$9 sm:$0xff] %v2282
    %2571 = vst [vmem:[%s2343] ss:$9 sm:$0xff] %v2283
    %2572 = vst [vmem:[%s2345] ss:$9 sm:$0xff] %v2284
    %2573 = vst [vmem:[%s2347] ss:$9 sm:$0xff] %v2285
    %v2574 = vld [vmem:[#allocation1] sm:$0xff]
    %2575 = vst [vmem:[#allocation1] ss:$9 sm:$0xff] %v2286
    %2576 = vst [vmem:[%s2335] ss:$9 sm:$0xff] %v2287
    %2577 = vst [vmem:[%s2337] ss:$9 sm:$0xff] %v2288
    %2578 = vst [vmem:[%s2339] ss:$9 sm:$0xff] %v2289
    %2579 = vst [vmem:[%s2341] ss:$9 sm:$0xff] %v2290
    %2580 = vst [vmem:[%s2343] ss:$9 sm:$0xff] %v2291
    %2581 = vst [vmem:[%s2345] ss:$9 sm:$0xff] %v2292
    %2582 = vst [vmem:[%s2347] ss:$9 sm:$0xff] %v2293
    %v2583 = vld [vmem:[#allocation1] sm:$0xff]
    %2584 = vst [vmem:[#allocation1] ss:$9 sm:$0xff] %v2294
    %2585 = vst [vmem:[%s2335] ss:$9 sm:$0xff] %v2295
    %2586 = vst [vmem:[%s2337] ss:$9 sm:$0xff] %v2296
    %2587 = vst [vmem:[%s2339] ss:$9 sm:$0xff] %v2297
    %2588 = vst [vmem:[%s2341] ss:$9 sm:$0xff] %v2298
    %2589 = vst [vmem:[%s2343] ss:$9 sm:$0xff] %v2299
    %2590 = vst [vmem:[%s2345] ss:$9 sm:$0xff] %v2300
    %2591 = vst [vmem:[%s2347] ss:$9 sm:$0xff] %v2301
    %v2592 = vld [vmem:[#allocation1] sm:$0xff]
    %2593 = vst [vmem:[#allocation1] ss:$9 sm:$0xff] %v2302
    %2594 = vst [vmem:[%s2335] ss:$9 sm:$0xff] %v2303
    %2595 = vst [vmem:[%s2337] ss:$9 sm:$0xff] %v2304
    %2596 = vst [vmem:[%s2339] ss:$9 sm:$0xff] %v2305
    %2597 = vst [vmem:[%s2341] ss:$9 sm:$0xff] %v2306
    %2598 = vst [vmem:[%s2343] ss:$9 sm:$0xff] %v2307
    %2599 = vst [vmem:[%s2345] ss:$9 sm:$0xff] %v2308
    %2600 = vst [vmem:[%s2347] ss:$9 sm:$0xff] %v2309
    %v2601 = vld [vmem:[#allocation1] sm:$0xff]
    %2602 = vst [vmem:[#allocation1] ss:$9 sm:$0xff] %v2310
    %2603 = vst [vmem:[%s2335] ss:$9 sm:$0xff] %v2311
    %2604 = vst [vmem:[%s2337] ss:$9 sm:$0xff] %v2312
    %2605 = vst [vmem:[%s2339] ss:$9 sm:$0xff] %v2313
    %2606 = vst [vmem:[%s2341] ss:$9 sm:$0xff] %v2314
    %2607 = vst [vmem:[%s2343] ss:$9 sm:$0xff] %v2315
    %2608 = vst [vmem:[%s2345] ss:$9 sm:$0xff] %v2316
    %2609 = vst [vmem:[%s2347] ss:$9 sm:$0xff] %v2317
    %v2610 = vld [vmem:[#allocation1] sm:$0xff]
    %2611 = vst [vmem:[#allocation1] ss:$9 sm:$0xff] %v2318
    %2612 = vst [vmem:[%s2335] ss:$9 sm:$0xff] %v2319
    %2613 = vst [vmem:[%s2337] ss:$9 sm:$0xff] %v2320
    %2614 = vst [vmem:[%s2339] ss:$9 sm:$0xff] %v2321
    %2615 = vst [vmem:[%s2341] ss:$9 sm:$0xff] %v2322
    %2616 = vst [vmem:[%s2343] ss:$9 sm:$0xff] %v2323
    %2617 = vst [vmem:[%s2345] ss:$9 sm:$0xff] %v2324
    %2618 = vst [vmem:[%s2347] ss:$9 sm:$0xff] %v2325
    %v2619 = vld [vmem:[#allocation1] sm:$0xff]
    %2620 = vst [vmem:[#allocation1] ss:$9 sm:$0xff] %v2326
    %2621 = vst [vmem:[%s2335] ss:$9 sm:$0xff] %v2327
    %2622 = vst [vmem:[%s2337] ss:$9 sm:$0xff] %v2328
    %2623 = vst [vmem:[%s2339] ss:$9 sm:$0xff] %v2329
    %2624 = vst [vmem:[%s2341] ss:$9 sm:$0xff] %v2330
    %2625 = vst [vmem:[%s2343] ss:$9 sm:$0xff] %v2331
    %2626 = vst [vmem:[%s2345] ss:$9 sm:$0xff] %v2332
    %2627 = vst [vmem:[%s2347] ss:$9 sm:$0xff] %v2333
    %v2628 = vld [vmem:[#allocation1] sm:$0xff]
    %2629 = vset.pattern.permute.xlu0 0
    %2630 = vperm.xlu0 %2629, %v2349
    %v2631 = vpop.permute.xlu0 %2630
    %2632 = vset.pattern.permute.xlu0 0
    %2633 = vperm.xlu0 %2632, %v2358
    %v2634 = vpop.permute.xlu0 %2633
    %2635 = vset.pattern.permute.xlu0 0
    %2636 = vperm.xlu0 %2635, %v2367
    %v2637 = vpop.permute.xlu0 %2636
    %2638 = vset.pattern.permute.xlu0 0
    %2639 = vperm.xlu0 %2638, %v2376
    %v2640 = vpop.permute.xlu0 %2639
    %2641 = vset.pattern.permute.xlu0 0
    %2642 = vperm.xlu0 %2641, %v2385
    %v2643 = vpop.permute.xlu0 %2642
    %2644 = vset.pattern.permute.xlu0 0
    %2645 = vperm.xlu0 %2644, %v2394
    %v2646 = vpop.permute.xlu0 %2645
    %2647 = vset.pattern.permute.xlu0 0
    %2648 = vperm.xlu0 %2647, %v2403
    %v2649 = vpop.permute.xlu0 %2648
    %2650 = vset.pattern.permute.xlu0 0
    %2651 = vperm.xlu0 %2650, %v2412
    %v2652 = vpop.permute.xlu0 %2651
    %2653 = vset.pattern.permute.xlu0 0
    %2654 = vperm.xlu0 %2653, %v2421
    %v2655 = vpop.permute.xlu0 %2654
    %2656 = vset.pattern.permute.xlu0 0
    %2657 = vperm.xlu0 %2656, %v2430
    %v2658 = vpop.permute.xlu0 %2657
    %2659 = vset.pattern.permute.xlu0 0
    %2660 = vperm.xlu0 %2659, %v2439
    %v2661 = vpop.permute.xlu0 %2660
    %2662 = vset.pattern.permute.xlu0 0
    %2663 = vperm.xlu0 %2662, %v2448
    %v2664 = vpop.permute.xlu0 %2663
    %2665 = vset.pattern.permute.xlu0 0
    %2666 = vperm.xlu0 %2665, %v2457
    %v2667 = vpop.permute.xlu0 %2666
    %2668 = vset.pattern.permute.xlu0 0
    %2669 = vperm.xlu0 %2668, %v2466
    %v2670 = vpop.permute.xlu0 %2669
    %2671 = vset.pattern.permute.xlu0 0
    %2672 = vperm.xlu0 %2671, %v2475
    %v2673 = vpop.permute.xlu0 %2672
    %2674 = vset.pattern.permute.xlu0 0
    %2675 = vperm.xlu0 %2674, %v2484
    %v2676 = vpop.permute.xlu0 %2675
    %2677 = vset.pattern.permute.xlu0 0
    %2678 = vperm.xlu0 %2677, %v2493
    %v2679 = vpop.permute.xlu0 %2678
    %2680 = vset.pattern.permute.xlu0 0
    %2681 = vperm.xlu0 %2680, %v2502
    %v2682 = vpop.permute.xlu0 %2681
    %2683 = vset.pattern.permute.xlu0 0
    %2684 = vperm.xlu0 %2683, %v2511
    %v2685 = vpop.permute.xlu0 %2684
    %2686 = vset.pattern.permute.xlu0 0
    %2687 = vperm.xlu0 %2686, %v2520
    %v2688 = vpop.permute.xlu0 %2687
    %2689 = vset.pattern.permute.xlu0 0
    %2690 = vperm.xlu0 %2689, %v2529
    %v2691 = vpop.permute.xlu0 %2690
    %2692 = vset.pattern.permute.xlu0 0
    %2693 = vperm.xlu0 %2692, %v2538
    %v2694 = vpop.permute.xlu0 %2693
    %2695 = vset.pattern.permute.xlu0 0
    %2696 = vperm.xlu0 %2695, %v2547
    %v2697 = vpop.permute.xlu0 %2696
    %2698 = vset.pattern.permute.xlu0 0
    %2699 = vperm.xlu0 %2698, %v2556
    %v2700 = vpop.permute.xlu0 %2699
    %2701 = vset.pattern.permute.xlu0 0
    %2702 = vperm.xlu0 %2701, %v2565
    %v2703 = vpop.permute.xlu0 %2702
    %2704 = vset.pattern.permute.xlu0 0
    %2705 = vperm.xlu0 %2704, %v2574
    %v2706 = vpop.permute.xlu0 %2705
    %2707 = vset.pattern.permute.xlu0 0
    %2708 = vperm.xlu0 %2707, %v2583
    %v2709 = vpop.permute.xlu0 %2708
    %2710 = vset.pattern.permute.xlu0 0
    %2711 = vperm.xlu0 %2710, %v2592
    %v2712 = vpop.permute.xlu0 %2711
    %2713 = vset.pattern.permute.xlu0 0
    %2714 = vperm.xlu0 %2713, %v2601
    %v2715 = vpop.permute.xlu0 %2714
    %2716 = vset.pattern.permute.xlu0 0
    %2717 = vperm.xlu0 %2716, %v2610
    %v2718 = vpop.permute.xlu0 %2717
    %2719 = vset.pattern.permute.xlu0 0
    %2720 = vperm.xlu0 %2719, %v2619
    %v2721 = vpop.permute.xlu0 %2720
    %2722 = vset.pattern.permute.xlu0 0
    %2723 = vperm.xlu0 %2722, %v2628
    %v2724 = vpop.permute.xlu0 %2723
    %v2725 = vlaneseq
    %v2726 = vand.u32 %v2725, 127
    %v2727 = vperm.slane %v2631, %v2726
    %v2728 = vadd.s32 %v2726, 4294967288
    %v2729 = vperm.slane %v2634, %v2728
    %vm2730 = vcmask 130112
    %v2731 = vsel %vm2730, %v2729, %v2727
    %v2732 = vadd.s32 %v2726, 4294967280
    %v2733 = vperm.slane %v2637, %v2732
    %vm2734 = vcmask 195712
    %v2735 = vsel %vm2734, %v2733, %v2731
    %v2736 = vadd.s32 %v2726, 4294967272
    %v2737 = vperm.slane %v2640, %v2736
    %vm2738 = vcmask 261312
    %v2739 = vsel %vm2738, %v2737, %v2735
    %v2740 = vadd.s32 %v2726, 4294967264
    %v2741 = vperm.slane %v2643, %v2740
    %vm2742 = vcmask 326912
    %v2743 = vsel %vm2742, %v2741, %v2739
    %v2744 = vadd.s32 %v2726, 4294967256
    %v2745 = vperm.slane %v2646, %v2744
    %vm2746 = vcmask 392512
    %v2747 = vsel %vm2746, %v2745, %v2743
    %v2748 = vadd.s32 %v2726, 4294967248
    %v2749 = vperm.slane %v2649, %v2748
    %vm2750 = vcmask 458112
    %v2751 = vsel %vm2750, %v2749, %v2747
    %v2752 = vadd.s32 %v2726, 4294967240
    %v2753 = vperm.slane %v2652, %v2752
    %vm2754 = vcmask 523712
    %v2755 = vsel %vm2754, %v2753, %v2751
    %v2756 = vadd.s32 %v2726, 4294967232
    %v2757 = vperm.slane %v2655, %v2756
    %vm2758 = vcmask 589312
    %v2759 = vsel %vm2758, %v2757, %v2755
    %v2760 = vadd.s32 %v2726, 4294967224
    %v2761 = vperm.slane %v2658, %v2760
    %vm2762 = vcmask 654912
    %v2763 = vsel %vm2762, %v2761, %v2759
    %v2764 = vadd.s32 %v2726, 4294967216
    %v2765 = vperm.slane %v2661, %v2764
    %vm2766 = vcmask 720512
    %v2767 = vsel %vm2766, %v2765, %v2763
    %v2768 = vadd.s32 %v2726, 4294967208
    %v2769 = vperm.slane %v2664, %v2768
    %vm2770 = vcmask 786112
    %v2771 = vsel %vm2770, %v2769, %v2767
    %v2772 = vadd.s32 %v2726, 4294967200
    %v2773 = vperm.slane %v2667, %v2772
    %vm2774 = vcmask 851712
    %v2775 = vsel %vm2774, %v2773, %v2771
    %v2776 = vadd.s32 %v2726, 4294967192
    %v2777 = vperm.slane %v2670, %v2776
    %vm2778 = vcmask 917312
    %v2779 = vsel %vm2778, %v2777, %v2775
    %v2780 = vadd.s32 %v2726, 4294967184
    %v2781 = vperm.slane %v2673, %v2780
    %vm2782 = vcmask 982912
    %v2783 = vsel %vm2782, %v2781, %v2779
    %v2784 = vadd.s32 %v2726, 4294967176
    %v2785 = vperm.slane %v2676, %v2784
    %vm2786 = vcmask 1048512
    %v2787 = vsel %vm2786, %v2785, %v2783
    %v2788 = vperm.slane %v2679, %v2726
    %v2789 = vperm.slane %v2682, %v2728
    %v2790 = vsel %vm2730, %v2789, %v2788
    %v2791 = vperm.slane %v2685, %v2732
    %v2792 = vsel %vm2734, %v2791, %v2790
    %v2793 = vperm.slane %v2688, %v2736
    %v2794 = vsel %vm2738, %v2793, %v2792
    %v2795 = vperm.slane %v2691, %v2740
    %v2796 = vsel %vm2742, %v2795, %v2794
    %v2797 = vperm.slane %v2694, %v2744
    %v2798 = vsel %vm2746, %v2797, %v2796
    %v2799 = vperm.slane %v2697, %v2748
    %v2800 = vsel %vm2750, %v2799, %v2798
    %v2801 = vperm.slane %v2700, %v2752
    %v2802 = vsel %vm2754, %v2801, %v2800
    %v2803 = vperm.slane %v2703, %v2756
    %v2804 = vsel %vm2758, %v2803, %v2802
    %v2805 = vperm.slane %v2706, %v2760
    %v2806 = vsel %vm2762, %v2805, %v2804
    %v2807 = vperm.slane %v2709, %v2764
    %v2808 = vsel %vm2766, %v2807, %v2806
    %v2809 = vperm.slane %v2712, %v2768
    %v2810 = vsel %vm2770, %v2809, %v2808
    %v2811 = vperm.slane %v2715, %v2772
    %v2812 = vsel %vm2774, %v2811, %v2810
    %v2813 = vperm.slane %v2718, %v2776
    %v2814 = vsel %vm2778, %v2813, %v2812
    %v2815 = vperm.slane %v2721, %v2780
    %v2816 = vsel %vm2782, %v2815, %v2814
    %v2817 = vperm.slane %v2724, %v2784
    %v2818 = vsel %vm2786, %v2817, %v2816
    %v2819 = vrot.slane %v2818, 7
    %vm2820 = vcmask 1040384
    %v2821 = vsel %vm2820, %v2787, %v2819
    %v2823 = vlaneseq
    %vm2824 = vcmp.ge.s32.totalorder %v2823, 0
    %vm2825 = vcmp.lt.s32.totalorder %v2823, 256
    %vm2826 = vmand %vm2824, %vm2825
    %2827 = vst.msk [vmem:[#allocation3] sm:$0x3] %vm2826, %v2821
    // Predicated region
    $region38: #{tpu_custom_call.1} parent=1 // pred_check
      _
    $region39: #{tpu_custom_call.1} parent=1 // pred_check_branch
      %2829 = sbr.rel (0) target = $region41
    $region40: #{tpu_custom_call.1} parent=1 // pred_region
      %2831 = vsyncadd [#allocation4], 0
      %s2833 = sshll.u32 [#allocation3], 4
      %s2834 = int_to_ptr.vmem [resolvable:$true] %s2833
      %s2835 = sshll.u32 %s9, 4
      %s2836 = int_to_ptr.hbm [resolvable:$true] %s2835
      %2838 = dma.vmem_to_hbm [thread:$0]  %s2834, 32, %s2836, [#allocation4]
    $region41: #{tpu_custom_call.1} parent=1 // pred_fallthru
      _
    // Predicated region
    $region42: #{tpu_custom_call.1} parent=1 // pred_check
      _
    $region43: #{tpu_custom_call.1} parent=1 // pred_check_branch
      %2840 = sbr.rel (0) target = $region45
    $region44: #{tpu_custom_call.1} parent=1 // pred_region
      %2842 = dma.done [#allocation4], 32
    $region45: #{tpu_custom_call.1} parent=1 // pred_fallthru
      _
    %2843 = vsyncpa [#allocation4], 1

</llo_original>
